<compile_context>
chip_gen: v6e
topology: v6e:2x2x1
jax: 0.10.0
libtpu: 0.0.40
codegen_flags: <defaults>
</compile_context>

<pallas_src>
import math

import jax
import jax.numpy as jnp
from jax.experimental import pallas as pl
from jax.experimental.pallas import tpu as pltpu

# ----------------------------- "config" -------------------------------------
VOCAB = 50      # vocab size
B = 2           # batch
S = 8           # sequence length (pad_size)
D = 32          # d_model
H = 4           # num heads
DH = D // H     # head dim
DFF = 64        # feed-forward hidden
C = 5           # num_classes
EPS = 1e-5      # LayerNorm eps (torch default)

LANES = 128     # lane-dense output width

# packed weight-slab column offsets (input dim = D for all of these)
_QKV0, _QKV1 = 0, 3 * D            # 0   .. 96
_WO0, _WO1 = 3 * D, 4 * D          # 96  .. 128
_W10, _W11 = 4 * D, 4 * D + DFF    # 128 .. 192
_FC0, _FC1 = 4 * D + DFF, 4 * D + DFF + LANES   # 192 .. 320
WD_COLS = _FC1


def _layernorm(x, gamma, beta):
    mu = jnp.mean(x, axis=-1, keepdims=True)
    var = jnp.mean((x - mu) ** 2, axis=-1, keepdims=True)
    return (x - mu) * jax.lax.rsqrt(var + EPS) * gamma + beta


# ------------------------------ kernel ---------------------------------------
def transformer_kernel(x_ref, wd_ref, w2_ref, bias_ref, out_ref):
    # x_ref:    (B*S, D)   activations (embedding + positional encoding)
    # wd_ref:   (D, 320)   [wq|wk|wv|wo|w1|fcw_pad]
    # w2_ref:   (DFF, D)
    # bias_ref: (9, 128)   packed bias / gamma / beta rows (see pack_params)
    # out_ref:  (B, 128)   lane-dense logits (first C lanes valid)
    x = x_ref[...]                                                  # (B*S, D)
    wd = wd_ref[...]
    bias = bias_ref[...]

    # Fused QKV projection: one MXU push of N = 3*D.
    qkv = jnp.dot(x, wd[:, _QKV0:_QKV1],
                  preferred_element_type=jnp.float32) + bias[0:1, 0:3 * D]
    q = qkv[:, 0:D]
    k = qkv[:, D:2 * D]
    v = qkv[:, 2 * D:3 * D]

    scale = 1.0 / math.sqrt(DH)
    # Per-(batch, head) scaled-dot-product attention; everything stays in
    # registers, head outputs are concatenated (no VMEM scratch round-trip).
    ctx_rows = []
    for b in range(B):
        r0 = b * S
        heads = []
        for h in range(H):
            lo = h * DH
            qh = q[r0:r0 + S, lo:lo + DH]                           # (S, DH)
            kh = k[r0:r0 + S, lo:lo + DH]
            vh = v[r0:r0 + S, lo:lo + DH]
            s = jnp.dot(qh, kh.T,
                        preferred_element_type=jnp.float32) * scale  # (S, S)
            s = s - jnp.max(s, axis=-1, keepdims=True)
            p = jnp.exp(s)
            p = p * pl.reciprocal(jnp.sum(p, axis=-1, keepdims=True),
                                  approx=True)
            heads.append(jnp.dot(p, vh, preferred_element_type=jnp.float32))
        ctx_rows.append(jnp.concatenate(heads, axis=-1))            # (S, D)
    ctx = jnp.concatenate(ctx_rows, axis=0)                         # (B*S, D)

    # Output projection + residual + LayerNorm 1
    attn = jnp.dot(ctx, wd[:, _WO0:_WO1],
                   preferred_element_type=jnp.float32) + bias[1:2, 0:D]
    h1 = _layernorm(attn + x, bias[2:3, 0:D], bias[3:4, 0:D])

    # FFN (ReLU) + residual + LayerNorm 2
    ff = jnp.dot(h1, wd[:, _W10:_W11],
                 preferred_element_type=jnp.float32) + bias[4:5, 0:DFF]
    ff = jnp.maximum(ff, 0.0)
    ff = jnp.dot(ff, w2_ref[...],
                 preferred_element_type=jnp.float32) + bias[5:6, 0:D]
    h2 = _layernorm(ff + h1, bias[6:7, 0:D], bias[7:8, 0:D])

    # Last token of each batch element -> lane-dense classifier matmul.
    feat = jnp.concatenate(
        [h2[(b + 1) * S - 1:(b + 1) * S, :] for b in range(B)], axis=0)  # (B, D)
    logits = jnp.dot(feat, wd[:, _FC0:_FC1],
                     preferred_element_type=jnp.float32) + bias[8:9, :]
    out_ref[...] = logits                                           # (B, 128)


# ------------------------------ packing --------------------------------------
def pack_params(params):
    fcw_pad = jnp.pad(params["fcw"], ((0, 0), (0, LANES - C)))      # (D, 128)
    wd = jnp.concatenate([params["wq"], params["wk"], params["wv"],
                          params["wo"], params["w1"], fcw_pad],
                         axis=1).astype(jnp.float32)                # (D, 320)

    def row(vec):
        v = jnp.asarray(vec, jnp.float32).reshape(1, -1)
        return jnp.pad(v, ((0, 0), (0, LANES - v.shape[1])))

    bias = jnp.concatenate([
        row(jnp.concatenate([params["bq"], params["bk"], params["bv"]],
                            axis=1)),                               # row 0: bqkv
        row(params["bo"]),                                          # row 1
        row(params["g1"]), row(params["be1"]),                      # rows 2,3
        row(params["b1"]), row(params["b2"]),                       # rows 4,5
        row(params["g2"]), row(params["be2"]),                      # rows 6,7
        row(params["fcb"]),                                         # row 8
    ], axis=0)                                                      # (9, 128)
    return wd, params["w2"].astype(jnp.float32), bias


# ------------------------------ wrapper --------------------------------------
def transformer_text_forward(token_ids, params):
    # TODO(synk): embedding-table gather stays in plain JAX (data-dependent
    # row gather); everything downstream is fused into one Pallas kernel.
    x = jnp.take(params["embedding"], token_ids, axis=0) + params["pe"][None]
    x = x.reshape(B * S, D).astype(jnp.float32)                     # (16, 32)
    wd, w2, bias = pack_params(params)

    def full_spec(arr):
        nd = arr.ndim
        return pl.BlockSpec(arr.shape, lambda i, _nd=nd: (0,) * _nd)

    # Single grid step: the whole forward (all batch elements) in one shot.
    # NOTE(v7x): for realistic batch sizes, split B across a leading
    # grid axis of size 2 with dimension_semantics=("parallel",) to use both
    # TensorCores; at B=2 the per-core work is too small to matter.
    out = pl.pallas_call(
        transformer_kernel,
        out_shape=jax.ShapeDtypeStruct((B, LANES), jnp.float32),
        grid=(1,),
        in_specs=[full_spec(x), full_spec(wd), full_spec(w2), full_spec(bias)],
        out_specs=pl.BlockSpec((B, LANES), lambda i: (0, 0)),
        compiler_params=pltpu.CompilerParams(
            dimension_semantics=("arbitrary",)),
    )(x, wd, w2, bias)
    return out[:, :C]                                               # (B, C)


# --------------------------- reference (plain JAX) ----------------------------
def reference_forward(token_ids, params):
    x = jnp.take(params["embedding"], token_ids, axis=0) + params["pe"][None]
    p = params

    def one(xb):
        q = xb @ p["wq"] + p["bq"]
        k = xb @ p["wk"] + p["bk"]
        v = xb @ p["wv"] + p["bv"]
        heads = []
        for h in range(H):
            sl = slice(h * DH, (h + 1) * DH)
            s = (q[:, sl] @ k[:, sl].T) / math.sqrt(DH)
            a = jax.nn.softmax(s, axis=-1)
            heads.append(a @ v[:, sl])
        ctx = jnp.concatenate(heads, axis=-1)
        h1 = _layernorm(ctx @ p["wo"] + p["bo"] + xb, p["g1"], p["be1"])
        ff = jnp.maximum(h1 @ p["w1"] + p["b1"], 0.0) @ p["w2"] + p["b2"]
        h2 = _layernorm(ff + h1, p["g2"], p["be2"])
        return h2[-1:, :] @ p["fcw"] + p["fcb"]

    return jnp.concatenate([one(x[b]) for b in range(B)], axis=0)


# ------------------------------ params ---------------------------------------
def make_params(key):
    ks = jax.random.split(key, 12)
    n = lambda k, shape: 0.05 * jax.random.normal(k, shape, jnp.float32)

    # Sinusoidal positional encoding (standard PositionalEmbedding).
    pos = jnp.arange(S, dtype=jnp.float32)[:, None]
    i = jnp.arange(D)[None, :]
    angle = pos / jnp.power(10000.0, (2 * (i // 2)).astype(jnp.float32) / D)
    pe = jnp.where(i % 2 == 0, jnp.sin(angle), jnp.cos(angle)).astype(jnp.float32)

    return {
        "embedding": n(ks[0], (VOCAB, D)),
        "pe": pe,
        "wq": n(ks[1], (D, D)), "bq": jnp.zeros((1, D), jnp.float32),
        "wk": n(ks[2], (D, D)), "bk": jnp.zeros((1, D), jnp.float32),
        "wv": n(ks[3], (D, D)), "bv": jnp.zeros((1, D), jnp.float32),
        "wo": n(ks[4], (D, D)), "bo": jnp.zeros((1, D), jnp.float32),
        "g1": jnp.ones((1, D), jnp.float32), "be1": jnp.zeros((1, D), jnp.float32),
        "w1": n(ks[5], (D, DFF)), "b1": jnp.zeros((1, DFF), jnp.float32),
        "w2": n(ks[6], (DFF, D)), "b2": jnp.zeros((1, D), jnp.float32),
        "g2": jnp.ones((1, D), jnp.float32), "be2": jnp.zeros((1, D), jnp.float32),
        "fcw": n(ks[7], (D, C)), "fcb": jnp.zeros((1, C), jnp.float32),
    }


if __name__ == "__main__":
    key = jax.random.PRNGKey(0)
    k_tok, k_par = jax.random.split(key)
    token_ids = jax.random.randint(k_tok, (B, S), 0, VOCAB)
    params = make_params(k_par)

    logits = transformer_text_forward(token_ids, params)
    logits = jax.block_until_ready(logits)

    ref = reference_forward(token_ids, params)
    assert logits.shape == (B, C)
    assert jnp.allclose(logits, ref, rtol=1e-2, atol=1e-2), (logits, ref)

    print("KERNEL_OK")
</pallas_src>

<mosaic_0001>
module attributes {stable_mosaic.version = 11 : i64} {
  func.func @transformer_kernel(%arg0: i32, %arg1: memref<16x32xf32, #tpu.memory_space<vmem>>, %arg2: memref<32x320xf32, #tpu.memory_space<vmem>>, %arg3: memref<64x32xf32, #tpu.memory_space<vmem>>, %arg4: memref<9x128xf32, #tpu.memory_space<vmem>>, %arg5: memref<2x128xf32, #tpu.memory_space<vmem>>) attributes {dimension_semantics = [#tpu.dimension_semantics<arbitrary>], iteration_bounds = array<i64: 1>, scalar_prefetch = 0 : i64, scratch_operands = 0 : i64, tpu.core_type = #tpu.core_type<tc>, window_params = [{pipeline_mode = #tpu.pipeline_mode<synchronous>, transform_indices = @transform_0, window_bounds = array<i64: 16, 32>}, {pipeline_mode = #tpu.pipeline_mode<synchronous>, transform_indices = @transform_1, window_bounds = array<i64: 32, 320>}, {pipeline_mode = #tpu.pipeline_mode<synchronous>, transform_indices = @transform_2, window_bounds = array<i64: 64, 32>}, {pipeline_mode = #tpu.pipeline_mode<synchronous>, transform_indices = @transform_3, window_bounds = array<i64: 9, 128>}, {pipeline_mode = #tpu.pipeline_mode<synchronous>, transform_indices = @transform_4, window_bounds = array<i64: 2, 128>}]} {
    %c0 = arith.constant 0 : index
    %c0_0 = arith.constant 0 : index
    %0 = vector.load %arg1[%c0, %c0_0] : memref<16x32xf32, #tpu.memory_space<vmem>>, vector<16x32xf32>
    %c0_1 = arith.constant 0 : index
    %c0_2 = arith.constant 0 : index
    %1 = vector.load %arg2[%c0_1, %c0_2] : memref<32x320xf32, #tpu.memory_space<vmem>>, vector<32x320xf32>
    %c0_3 = arith.constant 0 : index
    %c0_4 = arith.constant 0 : index
    %2 = vector.load %arg4[%c0_3, %c0_4] : memref<9x128xf32, #tpu.memory_space<vmem>>, vector<9x128xf32>
    %3 = vector.extract_strided_slice %1 {offsets = [0, 0], sizes = [32, 96], strides = [1, 1]} : vector<32x320xf32> to vector<32x96xf32>
    %cst = arith.constant dense<0.000000e+00> : vector<16x96xf32>
    %4 = tpu.matmul %0, %3, %cst {dimension_numbers = #tpu.dot_dimension_numbers<[1], [0], [0], [1], [0, 0, 1, 1], [], []>} : vector<16x32xf32>, vector<32x96xf32>, vector<16x96xf32> -> vector<16x96xf32>
    %5 = vector.extract_strided_slice %2 {offsets = [0, 0], sizes = [1, 96], strides = [1, 1]} : vector<9x128xf32> to vector<1x96xf32>
    %6 = vector.broadcast %5 : vector<1x96xf32> to vector<16x96xf32>
    %7 = arith.addf %4, %6 : vector<16x96xf32>
    %8 = vector.extract_strided_slice %7 {offsets = [0, 0], sizes = [16, 32], strides = [1, 1]} : vector<16x96xf32> to vector<16x32xf32>
    %9 = vector.extract_strided_slice %7 {offsets = [0, 32], sizes = [16, 32], strides = [1, 1]} : vector<16x96xf32> to vector<16x32xf32>
    %10 = vector.extract_strided_slice %7 {offsets = [0, 64], sizes = [16, 32], strides = [1, 1]} : vector<16x96xf32> to vector<16x32xf32>
    %11 = vector.extract_strided_slice %8 {offsets = [0, 0], sizes = [8, 8], strides = [1, 1]} : vector<16x32xf32> to vector<8x8xf32>
    %12 = vector.extract_strided_slice %9 {offsets = [0, 0], sizes = [8, 8], strides = [1, 1]} : vector<16x32xf32> to vector<8x8xf32>
    %13 = vector.extract_strided_slice %10 {offsets = [0, 0], sizes = [8, 8], strides = [1, 1]} : vector<16x32xf32> to vector<8x8xf32>
    %14 = tpu.transpose %12, [1, 0] : vector<8x8xf32> -> vector<8x8xf32>
    %cst_5 = arith.constant dense<0.000000e+00> : vector<8x8xf32>
    %15 = tpu.matmul %11, %14, %cst_5 {dimension_numbers = #tpu.dot_dimension_numbers<[1], [0], [0], [1], [0, 0, 1, 1], [], []>} : vector<8x8xf32>, vector<8x8xf32>, vector<8x8xf32> -> vector<8x8xf32>
    %cst_6 = arith.constant 0.353553385 : f32
    %16 = vector.broadcast %cst_6 : f32 to vector<8x8xf32>
    %17 = arith.mulf %15, %16 : vector<8x8xf32>
    %cst_7 = arith.constant dense<0xFF800000> : vector<8xf32>
    %18 = vector.multi_reduction <maximumf>, %17, %cst_7 [1] : vector<8x8xf32> to vector<8xf32>
    %19 = vector.shape_cast %18 : vector<8xf32> to vector<8x1xf32>
    %20 = vector.broadcast %19 : vector<8x1xf32> to vector<8x8xf32>
    %21 = arith.subf %17, %20 : vector<8x8xf32>
    %22 = math.exp %21 : vector<8x8xf32>
    %cst_8 = arith.constant dense<0.000000e+00> : vector<8xf32>
    %23 = vector.multi_reduction <add>, %22, %cst_8 [1] : vector<8x8xf32> to vector<8xf32>
    %24 = vector.shape_cast %23 : vector<8xf32> to vector<8x1xf32>
    %25 = tpu.reciprocal %24 {approx = true} : vector<8x1xf32> -> vector<8x1xf32>
    %26 = vector.broadcast %25 : vector<8x1xf32> to vector<8x8xf32>
    %27 = arith.mulf %22, %26 : vector<8x8xf32>
    %cst_9 = arith.constant dense<0.000000e+00> : vector<8x8xf32>
    %28 = tpu.matmul %27, %13, %cst_9 {dimension_numbers = #tpu.dot_dimension_numbers<[1], [0], [0], [1], [0, 0, 1, 1], [], []>} : vector<8x8xf32>, vector<8x8xf32>, vector<8x8xf32> -> vector<8x8xf32>
    %29 = vector.extract_strided_slice %8 {offsets = [0, 8], sizes = [8, 8], strides = [1, 1]} : vector<16x32xf32> to vector<8x8xf32>
    %30 = vector.extract_strided_slice %9 {offsets = [0, 8], sizes = [8, 8], strides = [1, 1]} : vector<16x32xf32> to vector<8x8xf32>
    %31 = vector.extract_strided_slice %10 {offsets = [0, 8], sizes = [8, 8], strides = [1, 1]} : vector<16x32xf32> to vector<8x8xf32>
    %32 = tpu.transpose %30, [1, 0] : vector<8x8xf32> -> vector<8x8xf32>
    %cst_10 = arith.constant dense<0.000000e+00> : vector<8x8xf32>
    %33 = tpu.matmul %29, %32, %cst_10 {dimension_numbers = #tpu.dot_dimension_numbers<[1], [0], [0], [1], [0, 0, 1, 1], [], []>} : vector<8x8xf32>, vector<8x8xf32>, vector<8x8xf32> -> vector<8x8xf32>
    %cst_11 = arith.constant 0.353553385 : f32
    %34 = vector.broadcast %cst_11 : f32 to vector<8x8xf32>
    %35 = arith.mulf %33, %34 : vector<8x8xf32>
    %cst_12 = arith.constant dense<0xFF800000> : vector<8xf32>
    %36 = vector.multi_reduction <maximumf>, %35, %cst_12 [1] : vector<8x8xf32> to vector<8xf32>
    %37 = vector.shape_cast %36 : vector<8xf32> to vector<8x1xf32>
    %38 = vector.broadcast %37 : vector<8x1xf32> to vector<8x8xf32>
    %39 = arith.subf %35, %38 : vector<8x8xf32>
    %40 = math.exp %39 : vector<8x8xf32>
    %cst_13 = arith.constant dense<0.000000e+00> : vector<8xf32>
    %41 = vector.multi_reduction <add>, %40, %cst_13 [1] : vector<8x8xf32> to vector<8xf32>
    %42 = vector.shape_cast %41 : vector<8xf32> to vector<8x1xf32>
    %43 = tpu.reciprocal %42 {approx = true} : vector<8x1xf32> -> vector<8x1xf32>
    %44 = vector.broadcast %43 : vector<8x1xf32> to vector<8x8xf32>
    %45 = arith.mulf %40, %44 : vector<8x8xf32>
    %cst_14 = arith.constant dense<0.000000e+00> : vector<8x8xf32>
    %46 = tpu.matmul %45, %31, %cst_14 {dimension_numbers = #tpu.dot_dimension_numbers<[1], [0], [0], [1], [0, 0, 1, 1], [], []>} : vector<8x8xf32>, vector<8x8xf32>, vector<8x8xf32> -> vector<8x8xf32>
    %47 = vector.extract_strided_slice %8 {offsets = [0, 16], sizes = [8, 8], strides = [1, 1]} : vector<16x32xf32> to vector<8x8xf32>
    %48 = vector.extract_strided_slice %9 {offsets = [0, 16], sizes = [8, 8], strides = [1, 1]} : vector<16x32xf32> to vector<8x8xf32>
    %49 = vector.extract_strided_slice %10 {offsets = [0, 16], sizes = [8, 8], strides = [1, 1]} : vector<16x32xf32> to vector<8x8xf32>
    %50 = tpu.transpose %48, [1, 0] : vector<8x8xf32> -> vector<8x8xf32>
    %cst_15 = arith.constant dense<0.000000e+00> : vector<8x8xf32>
    %51 = tpu.matmul %47, %50, %cst_15 {dimension_numbers = #tpu.dot_dimension_numbers<[1], [0], [0], [1], [0, 0, 1, 1], [], []>} : vector<8x8xf32>, vector<8x8xf32>, vector<8x8xf32> -> vector<8x8xf32>
    %cst_16 = arith.constant 0.353553385 : f32
    %52 = vector.broadcast %cst_16 : f32 to vector<8x8xf32>
    %53 = arith.mulf %51, %52 : vector<8x8xf32>
    %cst_17 = arith.constant dense<0xFF800000> : vector<8xf32>
    %54 = vector.multi_reduction <maximumf>, %53, %cst_17 [1] : vector<8x8xf32> to vector<8xf32>
    %55 = vector.shape_cast %54 : vector<8xf32> to vector<8x1xf32>
    %56 = vector.broadcast %55 : vector<8x1xf32> to vector<8x8xf32>
    %57 = arith.subf %53, %56 : vector<8x8xf32>
    %58 = math.exp %57 : vector<8x8xf32>
    %cst_18 = arith.constant dense<0.000000e+00> : vector<8xf32>
    %59 = vector.multi_reduction <add>, %58, %cst_18 [1] : vector<8x8xf32> to vector<8xf32>
    %60 = vector.shape_cast %59 : vector<8xf32> to vector<8x1xf32>
    %61 = tpu.reciprocal %60 {approx = true} : vector<8x1xf32> -> vector<8x1xf32>
    %62 = vector.broadcast %61 : vector<8x1xf32> to vector<8x8xf32>
    %63 = arith.mulf %58, %62 : vector<8x8xf32>
    %cst_19 = arith.constant dense<0.000000e+00> : vector<8x8xf32>
    %64 = tpu.matmul %63, %49, %cst_19 {dimension_numbers = #tpu.dot_dimension_numbers<[1], [0], [0], [1], [0, 0, 1, 1], [], []>} : vector<8x8xf32>, vector<8x8xf32>, vector<8x8xf32> -> vector<8x8xf32>
    %65 = vector.extract_strided_slice %8 {offsets = [0, 24], sizes = [8, 8], strides = [1, 1]} : vector<16x32xf32> to vector<8x8xf32>
    %66 = vector.extract_strided_slice %9 {offsets = [0, 24], sizes = [8, 8], strides = [1, 1]} : vector<16x32xf32> to vector<8x8xf32>
    %67 = vector.extract_strided_slice %10 {offsets = [0, 24], sizes = [8, 8], strides = [1, 1]} : vector<16x32xf32> to vector<8x8xf32>
    %68 = tpu.transpose %66, [1, 0] : vector<8x8xf32> -> vector<8x8xf32>
    %cst_20 = arith.constant dense<0.000000e+00> : vector<8x8xf32>
    %69 = tpu.matmul %65, %68, %cst_20 {dimension_numbers = #tpu.dot_dimension_numbers<[1], [0], [0], [1], [0, 0, 1, 1], [], []>} : vector<8x8xf32>, vector<8x8xf32>, vector<8x8xf32> -> vector<8x8xf32>
    %cst_21 = arith.constant 0.353553385 : f32
    %70 = vector.broadcast %cst_21 : f32 to vector<8x8xf32>
    %71 = arith.mulf %69, %70 : vector<8x8xf32>
    %cst_22 = arith.constant dense<0xFF800000> : vector<8xf32>
    %72 = vector.multi_reduction <maximumf>, %71, %cst_22 [1] : vector<8x8xf32> to vector<8xf32>
    %73 = vector.shape_cast %72 : vector<8xf32> to vector<8x1xf32>
    %74 = vector.broadcast %73 : vector<8x1xf32> to vector<8x8xf32>
    %75 = arith.subf %71, %74 : vector<8x8xf32>
    %76 = math.exp %75 : vector<8x8xf32>
    %cst_23 = arith.constant dense<0.000000e+00> : vector<8xf32>
    %77 = vector.multi_reduction <add>, %76, %cst_23 [1] : vector<8x8xf32> to vector<8xf32>
    %78 = vector.shape_cast %77 : vector<8xf32> to vector<8x1xf32>
    %79 = tpu.reciprocal %78 {approx = true} : vector<8x1xf32> -> vector<8x1xf32>
    %80 = vector.broadcast %79 : vector<8x1xf32> to vector<8x8xf32>
    %81 = arith.mulf %76, %80 : vector<8x8xf32>
    %cst_24 = arith.constant dense<0.000000e+00> : vector<8x8xf32>
    %82 = tpu.matmul %81, %67, %cst_24 {dimension_numbers = #tpu.dot_dimension_numbers<[1], [0], [0], [1], [0, 0, 1, 1], [], []>} : vector<8x8xf32>, vector<8x8xf32>, vector<8x8xf32> -> vector<8x8xf32>
    %83 = tpu.concatenate %28, %46, %64, %82 in 1 : vector<8x8xf32>, vector<8x8xf32>, vector<8x8xf32>, vector<8x8xf32> -> vector<8x32xf32>
    %84 = vector.extract_strided_slice %8 {offsets = [8, 0], sizes = [8, 8], strides = [1, 1]} : vector<16x32xf32> to vector<8x8xf32>
    %85 = vector.extract_strided_slice %9 {offsets = [8, 0], sizes = [8, 8], strides = [1, 1]} : vector<16x32xf32> to vector<8x8xf32>
    %86 = vector.extract_strided_slice %10 {offsets = [8, 0], sizes = [8, 8], strides = [1, 1]} : vector<16x32xf32> to vector<8x8xf32>
    %87 = tpu.transpose %85, [1, 0] : vector<8x8xf32> -> vector<8x8xf32>
    %cst_25 = arith.constant dense<0.000000e+00> : vector<8x8xf32>
    %88 = tpu.matmul %84, %87, %cst_25 {dimension_numbers = #tpu.dot_dimension_numbers<[1], [0], [0], [1], [0, 0, 1, 1], [], []>} : vector<8x8xf32>, vector<8x8xf32>, vector<8x8xf32> -> vector<8x8xf32>
    %cst_26 = arith.constant 0.353553385 : f32
    %89 = vector.broadcast %cst_26 : f32 to vector<8x8xf32>
    %90 = arith.mulf %88, %89 : vector<8x8xf32>
    %cst_27 = arith.constant dense<0xFF800000> : vector<8xf32>
    %91 = vector.multi_reduction <maximumf>, %90, %cst_27 [1] : vector<8x8xf32> to vector<8xf32>
    %92 = vector.shape_cast %91 : vector<8xf32> to vector<8x1xf32>
    %93 = vector.broadcast %92 : vector<8x1xf32> to vector<8x8xf32>
    %94 = arith.subf %90, %93 : vector<8x8xf32>
    %95 = math.exp %94 : vector<8x8xf32>
    %cst_28 = arith.constant dense<0.000000e+00> : vector<8xf32>
    %96 = vector.multi_reduction <add>, %95, %cst_28 [1] : vector<8x8xf32> to vector<8xf32>
    %97 = vector.shape_cast %96 : vector<8xf32> to vector<8x1xf32>
    %98 = tpu.reciprocal %97 {approx = true} : vector<8x1xf32> -> vector<8x1xf32>
    %99 = vector.broadcast %98 : vector<8x1xf32> to vector<8x8xf32>
    %100 = arith.mulf %95, %99 : vector<8x8xf32>
    %cst_29 = arith.constant dense<0.000000e+00> : vector<8x8xf32>
    %101 = tpu.matmul %100, %86, %cst_29 {dimension_numbers = #tpu.dot_dimension_numbers<[1], [0], [0], [1], [0, 0, 1, 1], [], []>} : vector<8x8xf32>, vector<8x8xf32>, vector<8x8xf32> -> vector<8x8xf32>
    %102 = vector.extract_strided_slice %8 {offsets = [8, 8], sizes = [8, 8], strides = [1, 1]} : vector<16x32xf32> to vector<8x8xf32>
    %103 = vector.extract_strided_slice %9 {offsets = [8, 8], sizes = [8, 8], strides = [1, 1]} : vector<16x32xf32> to vector<8x8xf32>
    %104 = vector.extract_strided_slice %10 {offsets = [8, 8], sizes = [8, 8], strides = [1, 1]} : vector<16x32xf32> to vector<8x8xf32>
    %105 = tpu.transpose %103, [1, 0] : vector<8x8xf32> -> vector<8x8xf32>
    %cst_30 = arith.constant dense<0.000000e+00> : vector<8x8xf32>
    %106 = tpu.matmul %102, %105, %cst_30 {dimension_numbers = #tpu.dot_dimension_numbers<[1], [0], [0], [1], [0, 0, 1, 1], [], []>} : vector<8x8xf32>, vector<8x8xf32>, vector<8x8xf32> -> vector<8x8xf32>
    %cst_31 = arith.constant 0.353553385 : f32
    %107 = vector.broadcast %cst_31 : f32 to vector<8x8xf32>
    %108 = arith.mulf %106, %107 : vector<8x8xf32>
    %cst_32 = arith.constant dense<0xFF800000> : vector<8xf32>
    %109 = vector.multi_reduction <maximumf>, %108, %cst_32 [1] : vector<8x8xf32> to vector<8xf32>
    %110 = vector.shape_cast %109 : vector<8xf32> to vector<8x1xf32>
    %111 = vector.broadcast %110 : vector<8x1xf32> to vector<8x8xf32>
    %112 = arith.subf %108, %111 : vector<8x8xf32>
    %113 = math.exp %112 : vector<8x8xf32>
    %cst_33 = arith.constant dense<0.000000e+00> : vector<8xf32>
    %114 = vector.multi_reduction <add>, %113, %cst_33 [1] : vector<8x8xf32> to vector<8xf32>
    %115 = vector.shape_cast %114 : vector<8xf32> to vector<8x1xf32>
    %116 = tpu.reciprocal %115 {approx = true} : vector<8x1xf32> -> vector<8x1xf32>
    %117 = vector.broadcast %116 : vector<8x1xf32> to vector<8x8xf32>
    %118 = arith.mulf %113, %117 : vector<8x8xf32>
    %cst_34 = arith.constant dense<0.000000e+00> : vector<8x8xf32>
    %119 = tpu.matmul %118, %104, %cst_34 {dimension_numbers = #tpu.dot_dimension_numbers<[1], [0], [0], [1], [0, 0, 1, 1], [], []>} : vector<8x8xf32>, vector<8x8xf32>, vector<8x8xf32> -> vector<8x8xf32>
    %120 = vector.extract_strided_slice %8 {offsets = [8, 16], sizes = [8, 8], strides = [1, 1]} : vector<16x32xf32> to vector<8x8xf32>
    %121 = vector.extract_strided_slice %9 {offsets = [8, 16], sizes = [8, 8], strides = [1, 1]} : vector<16x32xf32> to vector<8x8xf32>
    %122 = vector.extract_strided_slice %10 {offsets = [8, 16], sizes = [8, 8], strides = [1, 1]} : vector<16x32xf32> to vector<8x8xf32>
    %123 = tpu.transpose %121, [1, 0] : vector<8x8xf32> -> vector<8x8xf32>
    %cst_35 = arith.constant dense<0.000000e+00> : vector<8x8xf32>
    %124 = tpu.matmul %120, %123, %cst_35 {dimension_numbers = #tpu.dot_dimension_numbers<[1], [0], [0], [1], [0, 0, 1, 1], [], []>} : vector<8x8xf32>, vector<8x8xf32>, vector<8x8xf32> -> vector<8x8xf32>
    %cst_36 = arith.constant 0.353553385 : f32
    %125 = vector.broadcast %cst_36 : f32 to vector<8x8xf32>
    %126 = arith.mulf %124, %125 : vector<8x8xf32>
    %cst_37 = arith.constant dense<0xFF800000> : vector<8xf32>
    %127 = vector.multi_reduction <maximumf>, %126, %cst_37 [1] : vector<8x8xf32> to vector<8xf32>
    %128 = vector.shape_cast %127 : vector<8xf32> to vector<8x1xf32>
    %129 = vector.broadcast %128 : vector<8x1xf32> to vector<8x8xf32>
    %130 = arith.subf %126, %129 : vector<8x8xf32>
    %131 = math.exp %130 : vector<8x8xf32>
    %cst_38 = arith.constant dense<0.000000e+00> : vector<8xf32>
    %132 = vector.multi_reduction <add>, %131, %cst_38 [1] : vector<8x8xf32> to vector<8xf32>
    %133 = vector.shape_cast %132 : vector<8xf32> to vector<8x1xf32>
    %134 = tpu.reciprocal %133 {approx = true} : vector<8x1xf32> -> vector<8x1xf32>
    %135 = vector.broadcast %134 : vector<8x1xf32> to vector<8x8xf32>
    %136 = arith.mulf %131, %135 : vector<8x8xf32>
    %cst_39 = arith.constant dense<0.000000e+00> : vector<8x8xf32>
    %137 = tpu.matmul %136, %122, %cst_39 {dimension_numbers = #tpu.dot_dimension_numbers<[1], [0], [0], [1], [0, 0, 1, 1], [], []>} : vector<8x8xf32>, vector<8x8xf32>, vector<8x8xf32> -> vector<8x8xf32>
    %138 = vector.extract_strided_slice %8 {offsets = [8, 24], sizes = [8, 8], strides = [1, 1]} : vector<16x32xf32> to vector<8x8xf32>
    %139 = vector.extract_strided_slice %9 {offsets = [8, 24], sizes = [8, 8], strides = [1, 1]} : vector<16x32xf32> to vector<8x8xf32>
    %140 = vector.extract_strided_slice %10 {offsets = [8, 24], sizes = [8, 8], strides = [1, 1]} : vector<16x32xf32> to vector<8x8xf32>
    %141 = tpu.transpose %139, [1, 0] : vector<8x8xf32> -> vector<8x8xf32>
    %cst_40 = arith.constant dense<0.000000e+00> : vector<8x8xf32>
    %142 = tpu.matmul %138, %141, %cst_40 {dimension_numbers = #tpu.dot_dimension_numbers<[1], [0], [0], [1], [0, 0, 1, 1], [], []>} : vector<8x8xf32>, vector<8x8xf32>, vector<8x8xf32> -> vector<8x8xf32>
    %cst_41 = arith.constant 0.353553385 : f32
    %143 = vector.broadcast %cst_41 : f32 to vector<8x8xf32>
    %144 = arith.mulf %142, %143 : vector<8x8xf32>
    %cst_42 = arith.constant dense<0xFF800000> : vector<8xf32>
    %145 = vector.multi_reduction <maximumf>, %144, %cst_42 [1] : vector<8x8xf32> to vector<8xf32>
    %146 = vector.shape_cast %145 : vector<8xf32> to vector<8x1xf32>
    %147 = vector.broadcast %146 : vector<8x1xf32> to vector<8x8xf32>
    %148 = arith.subf %144, %147 : vector<8x8xf32>
    %149 = math.exp %148 : vector<8x8xf32>
    %cst_43 = arith.constant dense<0.000000e+00> : vector<8xf32>
    %150 = vector.multi_reduction <add>, %149, %cst_43 [1] : vector<8x8xf32> to vector<8xf32>
    %151 = vector.shape_cast %150 : vector<8xf32> to vector<8x1xf32>
    %152 = tpu.reciprocal %151 {approx = true} : vector<8x1xf32> -> vector<8x1xf32>
    %153 = vector.broadcast %152 : vector<8x1xf32> to vector<8x8xf32>
    %154 = arith.mulf %149, %153 : vector<8x8xf32>
    %cst_44 = arith.constant dense<0.000000e+00> : vector<8x8xf32>
    %155 = tpu.matmul %154, %140, %cst_44 {dimension_numbers = #tpu.dot_dimension_numbers<[1], [0], [0], [1], [0, 0, 1, 1], [], []>} : vector<8x8xf32>, vector<8x8xf32>, vector<8x8xf32> -> vector<8x8xf32>
    %156 = tpu.concatenate %101, %119, %137, %155 in 1 : vector<8x8xf32>, vector<8x8xf32>, vector<8x8xf32>, vector<8x8xf32> -> vector<8x32xf32>
    %157 = tpu.concatenate %83, %156 in 0 : vector<8x32xf32>, vector<8x32xf32> -> vector<16x32xf32>
    %158 = vector.extract_strided_slice %1 {offsets = [0, 96], sizes = [32, 32], strides = [1, 1]} : vector<32x320xf32> to vector<32x32xf32>
    %cst_45 = arith.constant dense<0.000000e+00> : vector<16x32xf32>
    %159 = tpu.matmul %157, %158, %cst_45 {dimension_numbers = #tpu.dot_dimension_numbers<[1], [0], [0], [1], [0, 0, 1, 1], [], []>} : vector<16x32xf32>, vector<32x32xf32>, vector<16x32xf32> -> vector<16x32xf32>
    %160 = vector.extract_strided_slice %2 {offsets = [1, 0], sizes = [1, 32], strides = [1, 1]} : vector<9x128xf32> to vector<1x32xf32>
    %161 = vector.broadcast %160 : vector<1x32xf32> to vector<16x32xf32>
    %162 = arith.addf %159, %161 : vector<16x32xf32>
    %163 = arith.addf %162, %0 : vector<16x32xf32>
    %164 = vector.extract_strided_slice %2 {offsets = [2, 0], sizes = [1, 32], strides = [1, 1]} : vector<9x128xf32> to vector<1x32xf32>
    %165 = vector.extract_strided_slice %2 {offsets = [3, 0], sizes = [1, 32], strides = [1, 1]} : vector<9x128xf32> to vector<1x32xf32>
    %cst_46 = arith.constant dense<0.000000e+00> : vector<16xf32>
    %166 = vector.multi_reduction <add>, %163, %cst_46 [1] : vector<16x32xf32> to vector<16xf32>
    %167 = vector.shape_cast %166 : vector<16xf32> to vector<16x1xf32>
    %cst_47 = arith.constant 3.200000e+01 : f32
    %168 = vector.broadcast %cst_47 : f32 to vector<16x1xf32>
    %169 = arith.divf %167, %168 : vector<16x1xf32>
    %170 = vector.broadcast %169 : vector<16x1xf32> to vector<16x32xf32>
    %171 = arith.subf %163, %170 : vector<16x32xf32>
    %172 = arith.mulf %171, %171 : vector<16x32xf32>
    %cst_48 = arith.constant dense<0.000000e+00> : vector<16xf32>
    %173 = vector.multi_reduction <add>, %172, %cst_48 [1] : vector<16x32xf32> to vector<16xf32>
    %174 = vector.shape_cast %173 : vector<16xf32> to vector<16x1xf32>
    %cst_49 = arith.constant 3.200000e+01 : f32
    %175 = vector.broadcast %cst_49 : f32 to vector<16x1xf32>
    %176 = arith.divf %174, %175 : vector<16x1xf32>
    %177 = vector.broadcast %169 : vector<16x1xf32> to vector<16x32xf32>
    %178 = arith.subf %163, %177 : vector<16x32xf32>
    %cst_50 = arith.constant 9.99999974E-6 : f32
    %179 = vector.broadcast %cst_50 : f32 to vector<16x1xf32>
    %180 = arith.addf %176, %179 : vector<16x1xf32>
    %181 = math.rsqrt %180 : vector<16x1xf32>
    %182 = vector.broadcast %181 : vector<16x1xf32> to vector<16x32xf32>
    %183 = arith.mulf %178, %182 : vector<16x32xf32>
    %184 = vector.broadcast %164 : vector<1x32xf32> to vector<16x32xf32>
    %185 = arith.mulf %183, %184 : vector<16x32xf32>
    %186 = vector.broadcast %165 : vector<1x32xf32> to vector<16x32xf32>
    %187 = arith.addf %185, %186 : vector<16x32xf32>
    %188 = vector.extract_strided_slice %1 {offsets = [0, 128], sizes = [32, 64], strides = [1, 1]} : vector<32x320xf32> to vector<32x64xf32>
    %cst_51 = arith.constant dense<0.000000e+00> : vector<16x64xf32>
    %189 = tpu.matmul %187, %188, %cst_51 {dimension_numbers = #tpu.dot_dimension_numbers<[1], [0], [0], [1], [0, 0, 1, 1], [], []>} : vector<16x32xf32>, vector<32x64xf32>, vector<16x64xf32> -> vector<16x64xf32>
    %190 = vector.extract_strided_slice %2 {offsets = [4, 0], sizes = [1, 64], strides = [1, 1]} : vector<9x128xf32> to vector<1x64xf32>
    %191 = vector.broadcast %190 : vector<1x64xf32> to vector<16x64xf32>
    %192 = arith.addf %189, %191 : vector<16x64xf32>
    %cst_52 = arith.constant 0.000000e+00 : f32
    %193 = vector.broadcast %cst_52 : f32 to vector<16x64xf32>
    %194 = arith.maximumf %192, %193 : vector<16x64xf32>
    %c0_53 = arith.constant 0 : index
    %c0_54 = arith.constant 0 : index
    %195 = vector.load %arg3[%c0_53, %c0_54] : memref<64x32xf32, #tpu.memory_space<vmem>>, vector<64x32xf32>
    %cst_55 = arith.constant dense<0.000000e+00> : vector<16x32xf32>
    %196 = tpu.matmul %194, %195, %cst_55 {dimension_numbers = #tpu.dot_dimension_numbers<[1], [0], [0], [1], [0, 0, 1, 1], [], []>} : vector<16x64xf32>, vector<64x32xf32>, vector<16x32xf32> -> vector<16x32xf32>
    %197 = vector.extract_strided_slice %2 {offsets = [5, 0], sizes = [1, 32], strides = [1, 1]} : vector<9x128xf32> to vector<1x32xf32>
    %198 = vector.broadcast %197 : vector<1x32xf32> to vector<16x32xf32>
    %199 = arith.addf %196, %198 : vector<16x32xf32>
    %200 = arith.addf %199, %187 : vector<16x32xf32>
    %201 = vector.extract_strided_slice %2 {offsets = [6, 0], sizes = [1, 32], strides = [1, 1]} : vector<9x128xf32> to vector<1x32xf32>
    %202 = vector.extract_strided_slice %2 {offsets = [7, 0], sizes = [1, 32], strides = [1, 1]} : vector<9x128xf32> to vector<1x32xf32>
    %cst_56 = arith.constant dense<0.000000e+00> : vector<16xf32>
    %203 = vector.multi_reduction <add>, %200, %cst_56 [1] : vector<16x32xf32> to vector<16xf32>
    %204 = vector.shape_cast %203 : vector<16xf32> to vector<16x1xf32>
    %cst_57 = arith.constant 3.200000e+01 : f32
    %205 = vector.broadcast %cst_57 : f32 to vector<16x1xf32>
    %206 = arith.divf %204, %205 : vector<16x1xf32>
    %207 = vector.broadcast %206 : vector<16x1xf32> to vector<16x32xf32>
    %208 = arith.subf %200, %207 : vector<16x32xf32>
    %209 = arith.mulf %208, %208 : vector<16x32xf32>
    %cst_58 = arith.constant dense<0.000000e+00> : vector<16xf32>
    %210 = vector.multi_reduction <add>, %209, %cst_58 [1] : vector<16x32xf32> to vector<16xf32>
    %211 = vector.shape_cast %210 : vector<16xf32> to vector<16x1xf32>
    %cst_59 = arith.constant 3.200000e+01 : f32
    %212 = vector.broadcast %cst_59 : f32 to vector<16x1xf32>
    %213 = arith.divf %211, %212 : vector<16x1xf32>
    %214 = vector.broadcast %206 : vector<16x1xf32> to vector<16x32xf32>
    %215 = arith.subf %200, %214 : vector<16x32xf32>
    %cst_60 = arith.constant 9.99999974E-6 : f32
    %216 = vector.broadcast %cst_60 : f32 to vector<16x1xf32>
    %217 = arith.addf %213, %216 : vector<16x1xf32>
    %218 = math.rsqrt %217 : vector<16x1xf32>
    %219 = vector.broadcast %218 : vector<16x1xf32> to vector<16x32xf32>
    %220 = arith.mulf %215, %219 : vector<16x32xf32>
    %221 = vector.broadcast %201 : vector<1x32xf32> to vector<16x32xf32>
    %222 = arith.mulf %220, %221 : vector<16x32xf32>
    %223 = vector.broadcast %202 : vector<1x32xf32> to vector<16x32xf32>
    %224 = arith.addf %222, %223 : vector<16x32xf32>
    %225 = vector.extract_strided_slice %224 {offsets = [7, 0], sizes = [1, 32], strides = [1, 1]} : vector<16x32xf32> to vector<1x32xf32>
    %226 = vector.extract_strided_slice %224 {offsets = [15, 0], sizes = [1, 32], strides = [1, 1]} : vector<16x32xf32> to vector<1x32xf32>
    %227 = tpu.concatenate %225, %226 in 0 : vector<1x32xf32>, vector<1x32xf32> -> vector<2x32xf32>
    %228 = vector.extract_strided_slice %1 {offsets = [0, 192], sizes = [32, 128], strides = [1, 1]} : vector<32x320xf32> to vector<32x128xf32>
    %cst_61 = arith.constant dense<0.000000e+00> : vector<2x128xf32>
    %229 = tpu.matmul %227, %228, %cst_61 {dimension_numbers = #tpu.dot_dimension_numbers<[1], [0], [0], [1], [0, 0, 1, 1], [], []>} : vector<2x32xf32>, vector<32x128xf32>, vector<2x128xf32> -> vector<2x128xf32>
    %230 = vector.extract_strided_slice %2 {offsets = [8, 0], sizes = [1, 128], strides = [1, 1]} : vector<9x128xf32> to vector<1x128xf32>
    %231 = vector.broadcast %230 : vector<1x128xf32> to vector<2x128xf32>
    %232 = arith.addf %229, %231 : vector<2x128xf32>
    %c0_62 = arith.constant 0 : index
    %c0_63 = arith.constant 0 : index
    %233 = vector.load %arg5[%c0_62, %c0_63] : memref<2x128xf32, #tpu.memory_space<vmem>>, vector<2x128xf32>
    tpu.vector_store %arg5[%c0_62, %c0_63], %232 {strides = array<i32>} : memref<2x128xf32, #tpu.memory_space<vmem>>, vector<2x128xf32>,
    return
  }
  func.func @transform_0(%arg0: i32) -> (i32, i32) {
    %c0_i32 = arith.constant 0 : i32
    %c0_i32_0 = arith.constant 0 : i32
    %c0_i32_1 = arith.constant 0 : i32
    return %c0_i32, %c0_i32_0 : i32, i32
  }
  func.func @transform_1(%arg0: i32) -> (i32, i32) {
    %c0_i32 = arith.constant 0 : i32
    %c0_i32_0 = arith.constant 0 : i32
    %c0_i32_1 = arith.constant 0 : i32
    return %c0_i32, %c0_i32_0 : i32, i32
  }
  func.func @transform_2(%arg0: i32) -> (i32, i32) {
    %c0_i32 = arith.constant 0 : i32
    %c0_i32_0 = arith.constant 0 : i32
    %c0_i32_1 = arith.constant 0 : i32
    return %c0_i32, %c0_i32_0 : i32, i32
  }
  func.func @transform_3(%arg0: i32) -> (i32, i32) {
    %c0_i32 = arith.constant 0 : i32
    %c0_i32_0 = arith.constant 0 : i32
    %c0_i32_1 = arith.constant 0 : i32
    return %c0_i32, %c0_i32_0 : i32, i32
  }
  func.func @transform_4(%arg0: i32) -> (i32, i32) {
    %c0_i32 = arith.constant 0 : i32
    %c0_i32_0 = arith.constant 0 : i32
    %c0_i32_1 = arith.constant 0 : i32
    return %c0_i32, %c0_i32_0 : i32, i32
  }
}

</mosaic_0001>

<llo_original>
// kernel: tpu_custom_call.1
$region0: #{tpu_custom_call.1}
  #allocation0 [shape = 'u32[]', space=smem, size = 0x4, offset = 0x4, fixed_abs, tag = 'smem constant byte address 0x4 - core index']
  #allocation1 [shape = 'u32[144,128]{1,0:T(1,128)}', space=vmem, size = 0x12000, scoped, tag = 'internal scratch']
  %s0 = inlined_call_operand.hbm [shape: f32[16,32], index: 0, kind: input, shape index: {}]
  %s1 = inlined_call_operand.vmem [shape: f32[32,320], index: 1, kind: input, shape index: {}]
  %s2 = inlined_call_operand.vmem [shape: f32[64,32], index: 2, kind: input, shape index: {}]
  %s3 = inlined_call_operand.hbm [shape: f32[9,128], index: 3, kind: input, shape index: {}]
  %s4 = inlined_call_operand.hbm [shape: f32[2,128], index: 4, kind: output, shape index: {}]
  %s5 = sld [smem:[#allocation0]]
  $region34: #{tpu_custom_call.1} parent=0
    _
  %s7 = ssub.s32 1, %s5
  %s8 = scalar_select 0, %s7, %s5
  $region1: #{tpu_custom_call.1} parent=0
    #allocation2 [shape = 'u8[8192]{0}', space=vmem, size = 0x2000, scoped, tag = 'input window, operand 0, single buffered']
    #allocation3 [shape = 's32[1]{0}', space=sflag, size = 0x4, scoped, tag = 'scoped memory for tpu_custom_call.1']
    #allocation4 [shape = 's32[1]{0}', space=sflag, size = 0x4, scoped, tag = 'scoped memory for tpu_custom_call.1']
    #allocation5 [shape = 'u8[8192]{0}', space=vmem, size = 0x2000, scoped, tag = 'input window, operand 3, single buffered']
    #allocation6 [shape = 's32[1]{0}', space=sflag, size = 0x4, scoped, tag = 'scoped memory for tpu_custom_call.1']
    #allocation7 [shape = 'u8[1024]{0}', space=vmem, size = 0x400, scoped, tag = 'output window, operand 0, single buffered']
    %9 = vsyncpa [#allocation3], 0
    %10 = vsyncpa [#allocation6], 0
    %11 = vsyncpa [#allocation4], 0
    // Predicated region
    $region2: #{tpu_custom_call.1} parent=1 // pred_check
      _
    $region3: #{tpu_custom_call.1} parent=1 // pred_check_branch
      %13 = sbr.rel (0) target = $region5
    $region4: #{tpu_custom_call.1} parent=1 // pred_region
      %s15 = ssub.s32 256, 256
      %16 = vsyncadd [#allocation3], %s15
      %s17 = sshll.u32 [#allocation2], 4
      %s18 = int_to_ptr.vmem [resolvable:$true] %s17
      %23 = dma.hbm_to_vmem [thread:$0]  %s0, 256, %s18, [#allocation3], 128, 128, 8
    $region5: #{tpu_custom_call.1} parent=1 // pred_fallthru
      _
    // Predicated region
    $region6: #{tpu_custom_call.1} parent=1 // pred_check
      _
    $region7: #{tpu_custom_call.1} parent=1 // pred_check_branch
      %25 = sbr.rel (0) target = $region9
    $region8: #{tpu_custom_call.1} parent=1 // pred_region
      _
    $region9: #{tpu_custom_call.1} parent=1 // pred_fallthru
      _
    // Predicated region
    $region10: #{tpu_custom_call.1} parent=1 // pred_check
      _
    $region11: #{tpu_custom_call.1} parent=1 // pred_check_branch
      %27 = sbr.rel (0) target = $region13
    $region12: #{tpu_custom_call.1} parent=1 // pred_region
      _
    $region13: #{tpu_custom_call.1} parent=1 // pred_fallthru
      _
    // Predicated region
    $region14: #{tpu_custom_call.1} parent=1 // pred_check
      _
    $region15: #{tpu_custom_call.1} parent=1 // pred_check_branch
      %29 = sbr.rel (0) target = $region17
    $region16: #{tpu_custom_call.1} parent=1 // pred_region
      %s31 = ssub.s32 256, 256
      %32 = vsyncadd [#allocation6], %s31
      %s33 = sshll.u32 [#allocation5], 4
      %s34 = int_to_ptr.vmem [resolvable:$true] %s33
      %39 = dma.hbm_to_vmem [thread:$0]  %s3, 256, %s34, [#allocation6], 128, 128, 8
    $region17: #{tpu_custom_call.1} parent=1 // pred_fallthru
      _
    // Predicated region
    $region18: #{tpu_custom_call.1} parent=1 // pred_check
      _
    $region19: #{tpu_custom_call.1} parent=1 // pred_check_branch
      %41 = sbr.rel (0) target = $region21
    $region20: #{tpu_custom_call.1} parent=1 // pred_region
      %42 = dma.done [#allocation3], 256
    $region21: #{tpu_custom_call.1} parent=1 // pred_fallthru
      _
    // Predicated region
    $region22: #{tpu_custom_call.1} parent=1 // pred_check
      _
    $region23: #{tpu_custom_call.1} parent=1 // pred_check_branch
      %44 = sbr.rel (0) target = $region25
    $region24: #{tpu_custom_call.1} parent=1 // pred_region
      %45 = dma.done [#allocation6], 256
    $region25: #{tpu_custom_call.1} parent=1 // pred_fallthru
      _
    %v46 = vld [vmem:[#allocation2] sm:$0xff]
    %v47 = vld [vmem:[#allocation2 + $0x8] sm:$0xff]
    %v48 = vld [vmem:[%s1] sm:$0xff]
    %v49 = vld [vmem:[%s1 + $0x8] sm:$0xff]
    %v50 = vld [vmem:[%s1 + $0x10] sm:$0xff]
    %v51 = vld [vmem:[%s1 + $0x18] sm:$0xff]
    %v52 = vld [vmem:[%s1 + $0x20] sm:$0xff]
    %v53 = vld [vmem:[%s1 + $0x28] sm:$0xff]
    %v54 = vld [vmem:[%s1 + $0x30] sm:$0xff]
    %v55 = vld [vmem:[%s1 + $0x38] sm:$0xff]
    %v56 = vld [vmem:[%s1 + $0x40] sm:$0xff]
    %v57 = vld [vmem:[%s1 + $0x48] sm:$0xff]
    %v58 = vld [vmem:[%s1 + $0x50] sm:$0xff]
    %v59 = vld [vmem:[%s1 + $0x58] sm:$0xff]
    %v60 = vld [vmem:[#allocation5] sm:$0xff]
    %v61 = vld [vmem:[#allocation5 + $0x8] sm:$0x1]
    %v62 = vlaneseq
    %v63 = vshrl.u32 %v62, 7
    %v64 = vsub.s32 0, %v63
    %v65 = vrot.slane %v60, %v64
    %vm66 = vcmask 261120
    %v68 = vsel %vm66, %v46, 0
    %v71 = vsel %vm66, %v47, 0
    %73 = vmatprep.subr.mxu0 0.0
    %74 = vmatpush1.msra.mxu0 0.0
    %75 = vmatprep.subr.mxu0 0.0
    %76 = vmatpush1.msra.mxu0 0.0
    %77 = vmatprep.subr.mxu0 0.0
    %78 = vmatpush1.msra.mxu0 0.0
    %79 = vmatprep.subr.mxu0 0.0
    %80 = vmatpush1.msra.mxu0 0.0
    %81 = vmatprep.subr.mxu0 0.0
    %82 = vmatpush1.msra.mxu0 0.0
    %83 = vmatprep.subr.mxu0 0.0
    %84 = vmatpush1.msra.mxu0 0.0
    %85 = vmatprep.subr.mxu0 0.0
    %86 = vmatpush1.msra.mxu0 0.0
    %87 = vmatprep.subr.mxu0 0.0
    %88 = vmatpush1.msra.mxu0 0.0
    %89 = vmatprep.subr.mxu0 0.0
    %90 = vmatpush1.msra.mxu0 0.0
    %91 = vmatprep.subr.mxu0 0.0
    %92 = vmatpush1.msra.mxu0 0.0
    %93 = vmatprep.subr.mxu0 0.0
    %94 = vmatpush1.msra.mxu0 0.0
    %95 = vmatprep.subr.mxu0 0.0
    %96 = vmatpush1.msra.mxu0 0.0
    %97 = vmatprep.subr.mxu0 0.0
    %98 = vmatpush1.msra.mxu0 %v57
    %99 = vmatprep.subr.mxu0 0.0
    %100 = vmatpush1.msra.mxu0 %v54
    %101 = vmatprep.subr.mxu0 0.0
    %102 = vmatpush1.msra.mxu0 %v51
    %103 = vmatprep.subr.mxu0 0.0
    %104 = vmatpush1.msra.mxu0 %v48
    %105 = vmatprep.subr.mxu0 0.0
    %106 = vmatpush2.msra.mxu0 0.0
    %107 = vmatprep.subr.mxu0 0.0
    %108 = vmatpush2.msra.mxu0 0.0
    %109 = vmatprep.subr.mxu0 0.0
    %110 = vmatpush2.msra.mxu0 0.0
    %111 = vmatprep.subr.mxu0 0.0
    %112 = vmatpush2.msra.mxu0 0.0
    %113 = vmatprep.subr.mxu0 0.0
    %114 = vmatpush2.msra.mxu0 0.0
    %115 = vmatprep.subr.mxu0 0.0
    %116 = vmatpush2.msra.mxu0 0.0
    %117 = vmatprep.subr.mxu0 0.0
    %118 = vmatpush2.msra.mxu0 0.0
    %119 = vmatprep.subr.mxu0 0.0
    %120 = vmatpush2.msra.mxu0 0.0
    %121 = vmatprep.subr.mxu0 0.0
    %122 = vmatpush2.msra.mxu0 0.0
    %123 = vmatprep.subr.mxu0 0.0
    %124 = vmatpush2.msra.mxu0 0.0
    %125 = vmatprep.subr.mxu0 0.0
    %126 = vmatpush2.msra.mxu0 0.0
    %127 = vmatprep.subr.mxu0 0.0
    %128 = vmatpush2.msra.mxu0 0.0
    %129 = vmatprep.subr.mxu0 0.0
    %130 = vmatpush2.msra.mxu0 0.0
    %131 = vmatprep.subr.mxu0 0.0
    %132 = vmatpush2.msra.mxu0 0.0
    %133 = vmatprep.subr.mxu0 0.0
    %134 = vmatpush2.msra.mxu0 0.0
    %135 = vmatprep.subr.mxu0 0.0
    %136 = vmatpush2.msra.mxu0 0.0
    %137 = vmatprep.mubr.f32.mxu0 0.0
    %138 = vmatmul.mubr.f32.gmra.mxu0 %v68
    %v139 = vpop.f32.mrf.mxu0
    %v140 = vadd.f32 %v65, %v139
    %v141 = vpop.f32.mrf.mxu0
    %142 = vmatprep.mubr.f32.mxu0 0.0
    %143 = vmatmul.mubr.f32.gmra.mxu0 %v71
    %v144 = vpop.f32.mrf.mxu0
    %v145 = vadd.f32 %v65, %v144
    %v146 = vpop.f32.mrf.mxu0
    %147 = vdwg.mxu0
    %149 = vrot.lane.b32.xlu0 %v140, 96
    %v150 = vpop.permute.xlu0 %149
    %vm151 = vcmask 64512
    %v152 = vsel %vm151, %v140, 0
    %v154 = vsel %vm151, %v150, 0
    %156 = vmatprep.subr.mxu0 0.0
    %157 = vmatpush1.xpose.msra.mxu0 0.0
    %158 = vmatprep.subr.mxu0 0.0
    %159 = vmatpush1.xpose.msra.mxu0 0.0
    %160 = vmatprep.subr.mxu0 0.0
    %161 = vmatpush1.xpose.msra.mxu0 0.0
    %162 = vmatprep.subr.mxu0 0.0
    %163 = vmatpush1.xpose.msra.mxu0 0.0
    %164 = vmatprep.subr.mxu0 0.0
    %165 = vmatpush1.xpose.msra.mxu0 0.0
    %166 = vmatprep.subr.mxu0 0.0
    %167 = vmatpush1.xpose.msra.mxu0 0.0
    %168 = vmatprep.subr.mxu0 0.0
    %169 = vmatpush1.xpose.msra.mxu0 0.0
    %170 = vmatprep.subr.mxu0 0.0
    %171 = vmatpush1.xpose.msra.mxu0 0.0
    %172 = vmatprep.subr.mxu0 0.0
    %173 = vmatpush1.xpose.msra.mxu0 0.0
    %174 = vmatprep.subr.mxu0 0.0
    %175 = vmatpush1.xpose.msra.mxu0 0.0
    %176 = vmatprep.subr.mxu0 0.0
    %177 = vmatpush1.xpose.msra.mxu0 0.0
    %178 = vmatprep.subr.mxu0 0.0
    %179 = vmatpush1.xpose.msra.mxu0 0.0
    %180 = vmatprep.subr.mxu0 0.0
    %181 = vmatpush1.xpose.msra.mxu0 0.0
    %182 = vmatprep.subr.mxu0 0.0
    %183 = vmatpush1.xpose.msra.mxu0 0.0
    %184 = vmatprep.subr.mxu0 0.0
    %185 = vmatpush1.xpose.msra.mxu0 0.0
    %186 = vmatprep.subr.mxu0 0.0
    %187 = vmatpush1.xpose.msra.mxu0 %v154
    %188 = vmatprep.subr.mxu0 0.0
    %189 = vmatpush2.xpose.msra.mxu0 0.0
    %190 = vmatprep.subr.mxu0 0.0
    %191 = vmatpush2.xpose.msra.mxu0 0.0
    %192 = vmatprep.subr.mxu0 0.0
    %193 = vmatpush2.xpose.msra.mxu0 0.0
    %194 = vmatprep.subr.mxu0 0.0
    %195 = vmatpush2.xpose.msra.mxu0 0.0
    %196 = vmatprep.subr.mxu0 0.0
    %197 = vmatpush2.xpose.msra.mxu0 0.0
    %198 = vmatprep.subr.mxu0 0.0
    %199 = vmatpush2.xpose.msra.mxu0 0.0
    %200 = vmatprep.subr.mxu0 0.0
    %201 = vmatpush2.xpose.msra.mxu0 0.0
    %202 = vmatprep.subr.mxu0 0.0
    %203 = vmatpush2.xpose.msra.mxu0 0.0
    %204 = vmatprep.subr.mxu0 0.0
    %205 = vmatpush2.xpose.msra.mxu0 0.0
    %206 = vmatprep.subr.mxu0 0.0
    %207 = vmatpush2.xpose.msra.mxu0 0.0
    %208 = vmatprep.subr.mxu0 0.0
    %209 = vmatpush2.xpose.msra.mxu0 0.0
    %210 = vmatprep.subr.mxu0 0.0
    %211 = vmatpush2.xpose.msra.mxu0 0.0
    %212 = vmatprep.subr.mxu0 0.0
    %213 = vmatpush2.xpose.msra.mxu0 0.0
    %214 = vmatprep.subr.mxu0 0.0
    %215 = vmatpush2.xpose.msra.mxu0 0.0
    %216 = vmatprep.subr.mxu0 0.0
    %217 = vmatpush2.xpose.msra.mxu0 0.0
    %218 = vmatprep.subr.mxu0 0.0
    %219 = vmatpush2.xpose.msra.mxu0 0.0
    %220 = vmatprep.mubr.f32.mxu0 0.0
    %221 = vmatmul.mubr.f32.gmra.mxu0 %v152
    %v222 = vpop.f32.mrf.mxu0
    %v223 = vadd.f32 0.0, %v222
    %v224 = vpop.f32.mrf.mxu0
    %225 = vdwg.mxu0
    %v226 = vmul.f32 %v223, 0.35355338
    %v227 = vsel %vm151, %v226, -inf
    %228 = vmax.xlane.f32.xlu0 %v227
    %v229 = vpop.xlane.xlu0 %228
    %v230 = vsub.f32 %v226, %v229
    %v231 = vmul.f32 %v230, 1.442695
    %v232 = vpow.pop %v231
    %v233 = vsel %vm151, %v232, 0.0
    %234 = vadd.xlane.f32.xlu0 %v233
    %v235 = vpop.xlane.xlu0 %234
    %v236 = vrcp.pop %v235
    %v237 = vmul.f32 %v232, %v236
    %238 = vrot.lane.b32.xlu0 %v140, 64
    %v239 = vpop.permute.xlu0 %238
    %v242 = vsel %vm151, %v237, 0
    %244 = vmatprep.subr.mxu0 0.0
    %245 = vmatpush1.msra.mxu0 0.0
    %246 = vmatprep.subr.mxu0 0.0
    %247 = vmatpush1.msra.mxu0 0.0
    %248 = vmatprep.subr.mxu0 0.0
    %249 = vmatpush1.msra.mxu0 0.0
    %250 = vmatprep.subr.mxu0 0.0
    %251 = vmatpush1.msra.mxu0 0.0
    %252 = vmatprep.subr.mxu0 0.0
    %253 = vmatpush1.msra.mxu0 0.0
    %254 = vmatprep.subr.mxu0 0.0
    %255 = vmatpush1.msra.mxu0 0.0
    %256 = vmatprep.subr.mxu0 0.0
    %257 = vmatpush1.msra.mxu0 0.0
    %258 = vmatprep.subr.mxu0 0.0
    %259 = vmatpush1.msra.mxu0 0.0
    %260 = vmatprep.subr.mxu0 0.0
    %261 = vmatpush1.msra.mxu0 0.0
    %262 = vmatprep.subr.mxu0 0.0
    %263 = vmatpush1.msra.mxu0 0.0
    %264 = vmatprep.subr.mxu0 0.0
    %265 = vmatpush1.msra.mxu0 0.0
    %266 = vmatprep.subr.mxu0 0.0
    %267 = vmatpush1.msra.mxu0 0.0
    %268 = vmatprep.subr.mxu0 0.0
    %269 = vmatpush1.msra.mxu0 0.0
    %270 = vmatprep.subr.mxu0 0.0
    %271 = vmatpush1.msra.mxu0 0.0
    %272 = vmatprep.subr.mxu0 0.0
    %273 = vmatpush1.msra.mxu0 0.0
    %274 = vmatprep.subr.mxu0 0.0
    %275 = vmatpush1.msra.mxu0 %v239
    %276 = vmatprep.subr.mxu0 0.0
    %277 = vmatpush2.msra.mxu0 0.0
    %278 = vmatprep.subr.mxu0 0.0
    %279 = vmatpush2.msra.mxu0 0.0
    %280 = vmatprep.subr.mxu0 0.0
    %281 = vmatpush2.msra.mxu0 0.0
    %282 = vmatprep.subr.mxu0 0.0
    %283 = vmatpush2.msra.mxu0 0.0
    %284 = vmatprep.subr.mxu0 0.0
    %285 = vmatpush2.msra.mxu0 0.0
    %286 = vmatprep.subr.mxu0 0.0
    %287 = vmatpush2.msra.mxu0 0.0
    %288 = vmatprep.subr.mxu0 0.0
    %289 = vmatpush2.msra.mxu0 0.0
    %290 = vmatprep.subr.mxu0 0.0
    %291 = vmatpush2.msra.mxu0 0.0
    %292 = vmatprep.subr.mxu0 0.0
    %293 = vmatpush2.msra.mxu0 0.0
    %294 = vmatprep.subr.mxu0 0.0
    %295 = vmatpush2.msra.mxu0 0.0
    %296 = vmatprep.subr.mxu0 0.0
    %297 = vmatpush2.msra.mxu0 0.0
    %298 = vmatprep.subr.mxu0 0.0
    %299 = vmatpush2.msra.mxu0 0.0
    %300 = vmatprep.subr.mxu0 0.0
    %301 = vmatpush2.msra.mxu0 0.0
    %302 = vmatprep.subr.mxu0 0.0
    %303 = vmatpush2.msra.mxu0 0.0
    %304 = vmatprep.subr.mxu0 0.0
    %305 = vmatpush2.msra.mxu0 0.0
    %306 = vmatprep.subr.mxu0 0.0
    %307 = vmatpush2.msra.mxu0 0.0
    %308 = vmatprep.mubr.f32.mxu0 0.0
    %309 = vmatmul.mubr.f32.gmra.mxu0 %v242
    %v310 = vpop.f32.mrf.mxu0
    %v311 = vadd.f32 0.0, %v310
    %v312 = vpop.f32.mrf.mxu0
    %313 = vdwg.mxu0
    %314 = vrot.lane.b32.xlu0 %v140, 120
    %v315 = vpop.permute.xlu0 %314
    %316 = vrot.lane.b32.xlu0 %v140, 88
    %v317 = vpop.permute.xlu0 %316
    %v318 = vsel %vm151, %v315, 0
    %v320 = vsel %vm151, %v317, 0
    %322 = vmatprep.subr.mxu0 0.0
    %323 = vmatpush1.xpose.msra.mxu0 0.0
    %324 = vmatprep.subr.mxu0 0.0
    %325 = vmatpush1.xpose.msra.mxu0 0.0
    %326 = vmatprep.subr.mxu0 0.0
    %327 = vmatpush1.xpose.msra.mxu0 0.0
    %328 = vmatprep.subr.mxu0 0.0
    %329 = vmatpush1.xpose.msra.mxu0 0.0
    %330 = vmatprep.subr.mxu0 0.0
    %331 = vmatpush1.xpose.msra.mxu0 0.0
    %332 = vmatprep.subr.mxu0 0.0
    %333 = vmatpush1.xpose.msra.mxu0 0.0
    %334 = vmatprep.subr.mxu0 0.0
    %335 = vmatpush1.xpose.msra.mxu0 0.0
    %336 = vmatprep.subr.mxu0 0.0
    %337 = vmatpush1.xpose.msra.mxu0 0.0
    %338 = vmatprep.subr.mxu0 0.0
    %339 = vmatpush1.xpose.msra.mxu0 0.0
    %340 = vmatprep.subr.mxu0 0.0
    %341 = vmatpush1.xpose.msra.mxu0 0.0
    %342 = vmatprep.subr.mxu0 0.0
    %343 = vmatpush1.xpose.msra.mxu0 0.0
    %344 = vmatprep.subr.mxu0 0.0
    %345 = vmatpush1.xpose.msra.mxu0 0.0
    %346 = vmatprep.subr.mxu0 0.0
    %347 = vmatpush1.xpose.msra.mxu0 0.0
    %348 = vmatprep.subr.mxu0 0.0
    %349 = vmatpush1.xpose.msra.mxu0 0.0
    %350 = vmatprep.subr.mxu0 0.0
    %351 = vmatpush1.xpose.msra.mxu0 0.0
    %352 = vmatprep.subr.mxu0 0.0
    %353 = vmatpush1.xpose.msra.mxu0 %v320
    %354 = vmatprep.subr.mxu0 0.0
    %355 = vmatpush2.xpose.msra.mxu0 0.0
    %356 = vmatprep.subr.mxu0 0.0
    %357 = vmatpush2.xpose.msra.mxu0 0.0
    %358 = vmatprep.subr.mxu0 0.0
    %359 = vmatpush2.xpose.msra.mxu0 0.0
    %360 = vmatprep.subr.mxu0 0.0
    %361 = vmatpush2.xpose.msra.mxu0 0.0
    %362 = vmatprep.subr.mxu0 0.0
    %363 = vmatpush2.xpose.msra.mxu0 0.0
    %364 = vmatprep.subr.mxu0 0.0
    %365 = vmatpush2.xpose.msra.mxu0 0.0
    %366 = vmatprep.subr.mxu0 0.0
    %367 = vmatpush2.xpose.msra.mxu0 0.0
    %368 = vmatprep.subr.mxu0 0.0
    %369 = vmatpush2.xpose.msra.mxu0 0.0
    %370 = vmatprep.subr.mxu0 0.0
    %371 = vmatpush2.xpose.msra.mxu0 0.0
    %372 = vmatprep.subr.mxu0 0.0
    %373 = vmatpush2.xpose.msra.mxu0 0.0
    %374 = vmatprep.subr.mxu0 0.0
    %375 = vmatpush2.xpose.msra.mxu0 0.0
    %376 = vmatprep.subr.mxu0 0.0
    %377 = vmatpush2.xpose.msra.mxu0 0.0
    %378 = vmatprep.subr.mxu0 0.0
    %379 = vmatpush2.xpose.msra.mxu0 0.0
    %380 = vmatprep.subr.mxu0 0.0
    %381 = vmatpush2.xpose.msra.mxu0 0.0
    %382 = vmatprep.subr.mxu0 0.0
    %383 = vmatpush2.xpose.msra.mxu0 0.0
    %384 = vmatprep.subr.mxu0 0.0
    %385 = vmatpush2.xpose.msra.mxu0 0.0
    %386 = vmatprep.mubr.f32.mxu0 0.0
    %387 = vmatmul.mubr.f32.gmra.mxu0 %v318
    %v388 = vpop.f32.mrf.mxu0
    %v389 = vadd.f32 0.0, %v388
    %v390 = vpop.f32.mrf.mxu0
    %391 = vdwg.mxu0
    %v392 = vmul.f32 %v389, 0.35355338
    %v393 = vsel %vm151, %v392, -inf
    %394 = vmax.xlane.f32.xlu0 %v393
    %v395 = vpop.xlane.xlu0 %394
    %v396 = vsub.f32 %v392, %v395
    %v397 = vmul.f32 %v396, 1.442695
    %v398 = vpow.pop %v397
    %v399 = vsel %vm151, %v398, 0.0
    %400 = vadd.xlane.f32.xlu0 %v399
    %v401 = vpop.xlane.xlu0 %400
    %v402 = vrcp.pop %v401
    %v403 = vmul.f32 %v398, %v402
    %404 = vrot.lane.b32.xlu0 %v140, 56
    %v405 = vpop.permute.xlu0 %404
    %v408 = vsel %vm151, %v403, 0
    %410 = vmatprep.subr.mxu0 0.0
    %411 = vmatpush1.msra.mxu0 0.0
    %412 = vmatprep.subr.mxu0 0.0
    %413 = vmatpush1.msra.mxu0 0.0
    %414 = vmatprep.subr.mxu0 0.0
    %415 = vmatpush1.msra.mxu0 0.0
    %416 = vmatprep.subr.mxu0 0.0
    %417 = vmatpush1.msra.mxu0 0.0
    %418 = vmatprep.subr.mxu0 0.0
    %419 = vmatpush1.msra.mxu0 0.0
    %420 = vmatprep.subr.mxu0 0.0
    %421 = vmatpush1.msra.mxu0 0.0
    %422 = vmatprep.subr.mxu0 0.0
    %423 = vmatpush1.msra.mxu0 0.0
    %424 = vmatprep.subr.mxu0 0.0
    %425 = vmatpush1.msra.mxu0 0.0
    %426 = vmatprep.subr.mxu0 0.0
    %427 = vmatpush1.msra.mxu0 0.0
    %428 = vmatprep.subr.mxu0 0.0
    %429 = vmatpush1.msra.mxu0 0.0
    %430 = vmatprep.subr.mxu0 0.0
    %431 = vmatpush1.msra.mxu0 0.0
    %432 = vmatprep.subr.mxu0 0.0
    %433 = vmatpush1.msra.mxu0 0.0
    %434 = vmatprep.subr.mxu0 0.0
    %435 = vmatpush1.msra.mxu0 0.0
    %436 = vmatprep.subr.mxu0 0.0
    %437 = vmatpush1.msra.mxu0 0.0
    %438 = vmatprep.subr.mxu0 0.0
    %439 = vmatpush1.msra.mxu0 0.0
    %440 = vmatprep.subr.mxu0 0.0
    %441 = vmatpush1.msra.mxu0 %v405
    %442 = vmatprep.subr.mxu0 0.0
    %443 = vmatpush2.msra.mxu0 0.0
    %444 = vmatprep.subr.mxu0 0.0
    %445 = vmatpush2.msra.mxu0 0.0
    %446 = vmatprep.subr.mxu0 0.0
    %447 = vmatpush2.msra.mxu0 0.0
    %448 = vmatprep.subr.mxu0 0.0
    %449 = vmatpush2.msra.mxu0 0.0
    %450 = vmatprep.subr.mxu0 0.0
    %451 = vmatpush2.msra.mxu0 0.0
    %452 = vmatprep.subr.mxu0 0.0
    %453 = vmatpush2.msra.mxu0 0.0
    %454 = vmatprep.subr.mxu0 0.0
    %455 = vmatpush2.msra.mxu0 0.0
    %456 = vmatprep.subr.mxu0 0.0
    %457 = vmatpush2.msra.mxu0 0.0
    %458 = vmatprep.subr.mxu0 0.0
    %459 = vmatpush2.msra.mxu0 0.0
    %460 = vmatprep.subr.mxu0 0.0
    %461 = vmatpush2.msra.mxu0 0.0
    %462 = vmatprep.subr.mxu0 0.0
    %463 = vmatpush2.msra.mxu0 0.0
    %464 = vmatprep.subr.mxu0 0.0
    %465 = vmatpush2.msra.mxu0 0.0
    %466 = vmatprep.subr.mxu0 0.0
    %467 = vmatpush2.msra.mxu0 0.0
    %468 = vmatprep.subr.mxu0 0.0
    %469 = vmatpush2.msra.mxu0 0.0
    %470 = vmatprep.subr.mxu0 0.0
    %471 = vmatpush2.msra.mxu0 0.0
    %472 = vmatprep.subr.mxu0 0.0
    %473 = vmatpush2.msra.mxu0 0.0
    %474 = vmatprep.mubr.f32.mxu0 0.0
    %475 = vmatmul.mubr.f32.gmra.mxu0 %v408
    %v476 = vpop.f32.mrf.mxu0
    %v477 = vadd.f32 0.0, %v476
    %v478 = vpop.f32.mrf.mxu0
    %479 = vdwg.mxu0
    %480 = vrot.lane.b32.xlu0 %v140, 112
    %v481 = vpop.permute.xlu0 %480
    %482 = vrot.lane.b32.xlu0 %v140, 80
    %v483 = vpop.permute.xlu0 %482
    %v484 = vsel %vm151, %v481, 0
    %v486 = vsel %vm151, %v483, 0
    %488 = vmatprep.subr.mxu0 0.0
    %489 = vmatpush1.xpose.msra.mxu0 0.0
    %490 = vmatprep.subr.mxu0 0.0
    %491 = vmatpush1.xpose.msra.mxu0 0.0
    %492 = vmatprep.subr.mxu0 0.0
    %493 = vmatpush1.xpose.msra.mxu0 0.0
    %494 = vmatprep.subr.mxu0 0.0
    %495 = vmatpush1.xpose.msra.mxu0 0.0
    %496 = vmatprep.subr.mxu0 0.0
    %497 = vmatpush1.xpose.msra.mxu0 0.0
    %498 = vmatprep.subr.mxu0 0.0
    %499 = vmatpush1.xpose.msra.mxu0 0.0
    %500 = vmatprep.subr.mxu0 0.0
    %501 = vmatpush1.xpose.msra.mxu0 0.0
    %502 = vmatprep.subr.mxu0 0.0
    %503 = vmatpush1.xpose.msra.mxu0 0.0
    %504 = vmatprep.subr.mxu0 0.0
    %505 = vmatpush1.xpose.msra.mxu0 0.0
    %506 = vmatprep.subr.mxu0 0.0
    %507 = vmatpush1.xpose.msra.mxu0 0.0
    %508 = vmatprep.subr.mxu0 0.0
    %509 = vmatpush1.xpose.msra.mxu0 0.0
    %510 = vmatprep.subr.mxu0 0.0
    %511 = vmatpush1.xpose.msra.mxu0 0.0
    %512 = vmatprep.subr.mxu0 0.0
    %513 = vmatpush1.xpose.msra.mxu0 0.0
    %514 = vmatprep.subr.mxu0 0.0
    %515 = vmatpush1.xpose.msra.mxu0 0.0
    %516 = vmatprep.subr.mxu0 0.0
    %517 = vmatpush1.xpose.msra.mxu0 0.0
    %518 = vmatprep.subr.mxu0 0.0
    %519 = vmatpush1.xpose.msra.mxu0 %v486
    %520 = vmatprep.subr.mxu0 0.0
    %521 = vmatpush2.xpose.msra.mxu0 0.0
    %522 = vmatprep.subr.mxu0 0.0
    %523 = vmatpush2.xpose.msra.mxu0 0.0
    %524 = vmatprep.subr.mxu0 0.0
    %525 = vmatpush2.xpose.msra.mxu0 0.0
    %526 = vmatprep.subr.mxu0 0.0
    %527 = vmatpush2.xpose.msra.mxu0 0.0
    %528 = vmatprep.subr.mxu0 0.0
    %529 = vmatpush2.xpose.msra.mxu0 0.0
    %530 = vmatprep.subr.mxu0 0.0
    %531 = vmatpush2.xpose.msra.mxu0 0.0
    %532 = vmatprep.subr.mxu0 0.0
    %533 = vmatpush2.xpose.msra.mxu0 0.0
    %534 = vmatprep.subr.mxu0 0.0
    %535 = vmatpush2.xpose.msra.mxu0 0.0
    %536 = vmatprep.subr.mxu0 0.0
    %537 = vmatpush2.xpose.msra.mxu0 0.0
    %538 = vmatprep.subr.mxu0 0.0
    %539 = vmatpush2.xpose.msra.mxu0 0.0
    %540 = vmatprep.subr.mxu0 0.0
    %541 = vmatpush2.xpose.msra.mxu0 0.0
    %542 = vmatprep.subr.mxu0 0.0
    %543 = vmatpush2.xpose.msra.mxu0 0.0
    %544 = vmatprep.subr.mxu0 0.0
    %545 = vmatpush2.xpose.msra.mxu0 0.0
    %546 = vmatprep.subr.mxu0 0.0
    %547 = vmatpush2.xpose.msra.mxu0 0.0
    %548 = vmatprep.subr.mxu0 0.0
    %549 = vmatpush2.xpose.msra.mxu0 0.0
    %550 = vmatprep.subr.mxu0 0.0
    %551 = vmatpush2.xpose.msra.mxu0 0.0
    %552 = vmatprep.mubr.f32.mxu0 0.0
    %553 = vmatmul.mubr.f32.gmra.mxu0 %v484
    %v554 = vpop.f32.mrf.mxu0
    %v555 = vadd.f32 0.0, %v554
    %v556 = vpop.f32.mrf.mxu0
    %557 = vdwg.mxu0
    %v558 = vmul.f32 %v555, 0.35355338
    %v559 = vsel %vm151, %v558, -inf
    %560 = vmax.xlane.f32.xlu0 %v559
    %v561 = vpop.xlane.xlu0 %560
    %v562 = vsub.f32 %v558, %v561
    %v563 = vmul.f32 %v562, 1.442695
    %v564 = vpow.pop %v563
    %v565 = vsel %vm151, %v564, 0.0
    %566 = vadd.xlane.f32.xlu0 %v565
    %v567 = vpop.xlane.xlu0 %566
    %v568 = vrcp.pop %v567
    %v569 = vmul.f32 %v564, %v568
    %570 = vrot.lane.b32.xlu0 %v140, 48
    %v571 = vpop.permute.xlu0 %570
    %v574 = vsel %vm151, %v569, 0
    %576 = vmatprep.subr.mxu0 0.0
    %577 = vmatpush1.msra.mxu0 0.0
    %578 = vmatprep.subr.mxu0 0.0
    %579 = vmatpush1.msra.mxu0 0.0
    %580 = vmatprep.subr.mxu0 0.0
    %581 = vmatpush1.msra.mxu0 0.0
    %582 = vmatprep.subr.mxu0 0.0
    %583 = vmatpush1.msra.mxu0 0.0
    %584 = vmatprep.subr.mxu0 0.0
    %585 = vmatpush1.msra.mxu0 0.0
    %586 = vmatprep.subr.mxu0 0.0
    %587 = vmatpush1.msra.mxu0 0.0
    %588 = vmatprep.subr.mxu0 0.0
    %589 = vmatpush1.msra.mxu0 0.0
    %590 = vmatprep.subr.mxu0 0.0
    %591 = vmatpush1.msra.mxu0 0.0
    %592 = vmatprep.subr.mxu0 0.0
    %593 = vmatpush1.msra.mxu0 0.0
    %594 = vmatprep.subr.mxu0 0.0
    %595 = vmatpush1.msra.mxu0 0.0
    %596 = vmatprep.subr.mxu0 0.0
    %597 = vmatpush1.msra.mxu0 0.0
    %598 = vmatprep.subr.mxu0 0.0
    %599 = vmatpush1.msra.mxu0 0.0
    %600 = vmatprep.subr.mxu0 0.0
    %601 = vmatpush1.msra.mxu0 0.0
    %602 = vmatprep.subr.mxu0 0.0
    %603 = vmatpush1.msra.mxu0 0.0
    %604 = vmatprep.subr.mxu0 0.0
    %605 = vmatpush1.msra.mxu0 0.0
    %606 = vmatprep.subr.mxu0 0.0
    %607 = vmatpush1.msra.mxu0 %v571
    %608 = vmatprep.subr.mxu0 0.0
    %609 = vmatpush2.msra.mxu0 0.0
    %610 = vmatprep.subr.mxu0 0.0
    %611 = vmatpush2.msra.mxu0 0.0
    %612 = vmatprep.subr.mxu0 0.0
    %613 = vmatpush2.msra.mxu0 0.0
    %614 = vmatprep.subr.mxu0 0.0
    %615 = vmatpush2.msra.mxu0 0.0
    %616 = vmatprep.subr.mxu0 0.0
    %617 = vmatpush2.msra.mxu0 0.0
    %618 = vmatprep.subr.mxu0 0.0
    %619 = vmatpush2.msra.mxu0 0.0
    %620 = vmatprep.subr.mxu0 0.0
    %621 = vmatpush2.msra.mxu0 0.0
    %622 = vmatprep.subr.mxu0 0.0
    %623 = vmatpush2.msra.mxu0 0.0
    %624 = vmatprep.subr.mxu0 0.0
    %625 = vmatpush2.msra.mxu0 0.0
    %626 = vmatprep.subr.mxu0 0.0
    %627 = vmatpush2.msra.mxu0 0.0
    %628 = vmatprep.subr.mxu0 0.0
    %629 = vmatpush2.msra.mxu0 0.0
    %630 = vmatprep.subr.mxu0 0.0
    %631 = vmatpush2.msra.mxu0 0.0
    %632 = vmatprep.subr.mxu0 0.0
    %633 = vmatpush2.msra.mxu0 0.0
    %634 = vmatprep.subr.mxu0 0.0
    %635 = vmatpush2.msra.mxu0 0.0
    %636 = vmatprep.subr.mxu0 0.0
    %637 = vmatpush2.msra.mxu0 0.0
    %638 = vmatprep.subr.mxu0 0.0
    %639 = vmatpush2.msra.mxu0 0.0
    %640 = vmatprep.mubr.f32.mxu0 0.0
    %641 = vmatmul.mubr.f32.gmra.mxu0 %v574
    %v642 = vpop.f32.mrf.mxu0
    %v643 = vadd.f32 0.0, %v642
    %v644 = vpop.f32.mrf.mxu0
    %645 = vdwg.mxu0
    %646 = vrot.lane.b32.xlu0 %v140, 104
    %v647 = vpop.permute.xlu0 %646
    %648 = vrot.lane.b32.xlu0 %v140, 72
    %v649 = vpop.permute.xlu0 %648
    %v650 = vsel %vm151, %v647, 0
    %v652 = vsel %vm151, %v649, 0
    %654 = vmatprep.subr.mxu0 0.0
    %655 = vmatpush1.xpose.msra.mxu0 0.0
    %656 = vmatprep.subr.mxu0 0.0
    %657 = vmatpush1.xpose.msra.mxu0 0.0
    %658 = vmatprep.subr.mxu0 0.0
    %659 = vmatpush1.xpose.msra.mxu0 0.0
    %660 = vmatprep.subr.mxu0 0.0
    %661 = vmatpush1.xpose.msra.mxu0 0.0
    %662 = vmatprep.subr.mxu0 0.0
    %663 = vmatpush1.xpose.msra.mxu0 0.0
    %664 = vmatprep.subr.mxu0 0.0
    %665 = vmatpush1.xpose.msra.mxu0 0.0
    %666 = vmatprep.subr.mxu0 0.0
    %667 = vmatpush1.xpose.msra.mxu0 0.0
    %668 = vmatprep.subr.mxu0 0.0
    %669 = vmatpush1.xpose.msra.mxu0 0.0
    %670 = vmatprep.subr.mxu0 0.0
    %671 = vmatpush1.xpose.msra.mxu0 0.0
    %672 = vmatprep.subr.mxu0 0.0
    %673 = vmatpush1.xpose.msra.mxu0 0.0
    %674 = vmatprep.subr.mxu0 0.0
    %675 = vmatpush1.xpose.msra.mxu0 0.0
    %676 = vmatprep.subr.mxu0 0.0
    %677 = vmatpush1.xpose.msra.mxu0 0.0
    %678 = vmatprep.subr.mxu0 0.0
    %679 = vmatpush1.xpose.msra.mxu0 0.0
    %680 = vmatprep.subr.mxu0 0.0
    %681 = vmatpush1.xpose.msra.mxu0 0.0
    %682 = vmatprep.subr.mxu0 0.0
    %683 = vmatpush1.xpose.msra.mxu0 0.0
    %684 = vmatprep.subr.mxu0 0.0
    %685 = vmatpush1.xpose.msra.mxu0 %v652
    %686 = vmatprep.subr.mxu0 0.0
    %687 = vmatpush2.xpose.msra.mxu0 0.0
    %688 = vmatprep.subr.mxu0 0.0
    %689 = vmatpush2.xpose.msra.mxu0 0.0
    %690 = vmatprep.subr.mxu0 0.0
    %691 = vmatpush2.xpose.msra.mxu0 0.0
    %692 = vmatprep.subr.mxu0 0.0
    %693 = vmatpush2.xpose.msra.mxu0 0.0
    %694 = vmatprep.subr.mxu0 0.0
    %695 = vmatpush2.xpose.msra.mxu0 0.0
    %696 = vmatprep.subr.mxu0 0.0
    %697 = vmatpush2.xpose.msra.mxu0 0.0
    %698 = vmatprep.subr.mxu0 0.0
    %699 = vmatpush2.xpose.msra.mxu0 0.0
    %700 = vmatprep.subr.mxu0 0.0
    %701 = vmatpush2.xpose.msra.mxu0 0.0
    %702 = vmatprep.subr.mxu0 0.0
    %703 = vmatpush2.xpose.msra.mxu0 0.0
    %704 = vmatprep.subr.mxu0 0.0
    %705 = vmatpush2.xpose.msra.mxu0 0.0
    %706 = vmatprep.subr.mxu0 0.0
    %707 = vmatpush2.xpose.msra.mxu0 0.0
    %708 = vmatprep.subr.mxu0 0.0
    %709 = vmatpush2.xpose.msra.mxu0 0.0
    %710 = vmatprep.subr.mxu0 0.0
    %711 = vmatpush2.xpose.msra.mxu0 0.0
    %712 = vmatprep.subr.mxu0 0.0
    %713 = vmatpush2.xpose.msra.mxu0 0.0
    %714 = vmatprep.subr.mxu0 0.0
    %715 = vmatpush2.xpose.msra.mxu0 0.0
    %716 = vmatprep.subr.mxu0 0.0
    %717 = vmatpush2.xpose.msra.mxu0 0.0
    %718 = vmatprep.mubr.f32.mxu0 0.0
    %719 = vmatmul.mubr.f32.gmra.mxu0 %v650
    %v720 = vpop.f32.mrf.mxu0
    %v721 = vadd.f32 0.0, %v720
    %v722 = vpop.f32.mrf.mxu0
    %723 = vdwg.mxu0
    %v724 = vmul.f32 %v721, 0.35355338
    %v725 = vsel %vm151, %v724, -inf
    %726 = vmax.xlane.f32.xlu0 %v725
    %v727 = vpop.xlane.xlu0 %726
    %v728 = vsub.f32 %v724, %v727
    %v729 = vmul.f32 %v728, 1.442695
    %v730 = vpow.pop %v729
    %v731 = vsel %vm151, %v730, 0.0
    %732 = vadd.xlane.f32.xlu0 %v731
    %v733 = vpop.xlane.xlu0 %732
    %v734 = vrcp.pop %v733
    %v735 = vmul.f32 %v730, %v734
    %736 = vrot.lane.b32.xlu0 %v140, 40
    %v737 = vpop.permute.xlu0 %736
    %v740 = vsel %vm151, %v735, 0
    %742 = vmatprep.subr.mxu0 0.0
    %743 = vmatpush1.msra.mxu0 0.0
    %744 = vmatprep.subr.mxu0 0.0
    %745 = vmatpush1.msra.mxu0 0.0
    %746 = vmatprep.subr.mxu0 0.0
    %747 = vmatpush1.msra.mxu0 0.0
    %748 = vmatprep.subr.mxu0 0.0
    %749 = vmatpush1.msra.mxu0 0.0
    %750 = vmatprep.subr.mxu0 0.0
    %751 = vmatpush1.msra.mxu0 0.0
    %752 = vmatprep.subr.mxu0 0.0
    %753 = vmatpush1.msra.mxu0 0.0
    %754 = vmatprep.subr.mxu0 0.0
    %755 = vmatpush1.msra.mxu0 0.0
    %756 = vmatprep.subr.mxu0 0.0
    %757 = vmatpush1.msra.mxu0 0.0
    %758 = vmatprep.subr.mxu0 0.0
    %759 = vmatpush1.msra.mxu0 0.0
    %760 = vmatprep.subr.mxu0 0.0
    %761 = vmatpush1.msra.mxu0 0.0
    %762 = vmatprep.subr.mxu0 0.0
    %763 = vmatpush1.msra.mxu0 0.0
    %764 = vmatprep.subr.mxu0 0.0
    %765 = vmatpush1.msra.mxu0 0.0
    %766 = vmatprep.subr.mxu0 0.0
    %767 = vmatpush1.msra.mxu0 0.0
    %768 = vmatprep.subr.mxu0 0.0
    %769 = vmatpush1.msra.mxu0 0.0
    %770 = vmatprep.subr.mxu0 0.0
    %771 = vmatpush1.msra.mxu0 0.0
    %772 = vmatprep.subr.mxu0 0.0
    %773 = vmatpush1.msra.mxu0 %v737
    %774 = vmatprep.subr.mxu0 0.0
    %775 = vmatpush2.msra.mxu0 0.0
    %776 = vmatprep.subr.mxu0 0.0
    %777 = vmatpush2.msra.mxu0 0.0
    %778 = vmatprep.subr.mxu0 0.0
    %779 = vmatpush2.msra.mxu0 0.0
    %780 = vmatprep.subr.mxu0 0.0
    %781 = vmatpush2.msra.mxu0 0.0
    %782 = vmatprep.subr.mxu0 0.0
    %783 = vmatpush2.msra.mxu0 0.0
    %784 = vmatprep.subr.mxu0 0.0
    %785 = vmatpush2.msra.mxu0 0.0
    %786 = vmatprep.subr.mxu0 0.0
    %787 = vmatpush2.msra.mxu0 0.0
    %788 = vmatprep.subr.mxu0 0.0
    %789 = vmatpush2.msra.mxu0 0.0
    %790 = vmatprep.subr.mxu0 0.0
    %791 = vmatpush2.msra.mxu0 0.0
    %792 = vmatprep.subr.mxu0 0.0
    %793 = vmatpush2.msra.mxu0 0.0
    %794 = vmatprep.subr.mxu0 0.0
    %795 = vmatpush2.msra.mxu0 0.0
    %796 = vmatprep.subr.mxu0 0.0
    %797 = vmatpush2.msra.mxu0 0.0
    %798 = vmatprep.subr.mxu0 0.0
    %799 = vmatpush2.msra.mxu0 0.0
    %800 = vmatprep.subr.mxu0 0.0
    %801 = vmatpush2.msra.mxu0 0.0
    %802 = vmatprep.subr.mxu0 0.0
    %803 = vmatpush2.msra.mxu0 0.0
    %804 = vmatprep.subr.mxu0 0.0
    %805 = vmatpush2.msra.mxu0 0.0
    %806 = vmatprep.mubr.f32.mxu0 0.0
    %807 = vmatmul.mubr.f32.gmra.mxu0 %v740
    %v808 = vpop.f32.mrf.mxu0
    %v809 = vadd.f32 0.0, %v808
    %v810 = vpop.f32.mrf.mxu0
    %811 = vdwg.mxu0
    %813 = vrot.lane.b32.xlu0 %v477, 8
    %v814 = vpop.permute.xlu0 %813
    %817 = vrot.lane.b32.xlu0 %v643, 16
    %v818 = vpop.permute.xlu0 %817
    %821 = vrot.lane.b32.xlu0 %v809, 24
    %v822 = vpop.permute.xlu0 %821
    %v824 = vsel %vm151, %v311, %v814
    %vm825 = vcmask 130048
    %v826 = vsel %vm825, %v824, %v818
    %vm827 = vcmask 195584
    %v828 = vsel %vm827, %v826, %v822
    %830 = vrot.lane.b32.xlu0 %v145, 96
    %v831 = vpop.permute.xlu0 %830
    %v832 = vsel %vm151, %v145, 0
    %v834 = vsel %vm151, %v831, 0
    %836 = vmatprep.subr.mxu0 0.0
    %837 = vmatpush1.xpose.msra.mxu0 0.0
    %838 = vmatprep.subr.mxu0 0.0
    %839 = vmatpush1.xpose.msra.mxu0 0.0
    %840 = vmatprep.subr.mxu0 0.0
    %841 = vmatpush1.xpose.msra.mxu0 0.0
    %842 = vmatprep.subr.mxu0 0.0
    %843 = vmatpush1.xpose.msra.mxu0 0.0
    %844 = vmatprep.subr.mxu0 0.0
    %845 = vmatpush1.xpose.msra.mxu0 0.0
    %846 = vmatprep.subr.mxu0 0.0
    %847 = vmatpush1.xpose.msra.mxu0 0.0
    %848 = vmatprep.subr.mxu0 0.0
    %849 = vmatpush1.xpose.msra.mxu0 0.0
    %850 = vmatprep.subr.mxu0 0.0
    %851 = vmatpush1.xpose.msra.mxu0 0.0
    %852 = vmatprep.subr.mxu0 0.0
    %853 = vmatpush1.xpose.msra.mxu0 0.0
    %854 = vmatprep.subr.mxu0 0.0
    %855 = vmatpush1.xpose.msra.mxu0 0.0
    %856 = vmatprep.subr.mxu0 0.0
    %857 = vmatpush1.xpose.msra.mxu0 0.0
    %858 = vmatprep.subr.mxu0 0.0
    %859 = vmatpush1.xpose.msra.mxu0 0.0
    %860 = vmatprep.subr.mxu0 0.0
    %861 = vmatpush1.xpose.msra.mxu0 0.0
    %862 = vmatprep.subr.mxu0 0.0
    %863 = vmatpush1.xpose.msra.mxu0 0.0
    %864 = vmatprep.subr.mxu0 0.0
    %865 = vmatpush1.xpose.msra.mxu0 0.0
    %866 = vmatprep.subr.mxu0 0.0
    %867 = vmatpush1.xpose.msra.mxu0 %v834
    %868 = vmatprep.subr.mxu0 0.0
    %869 = vmatpush2.xpose.msra.mxu0 0.0
    %870 = vmatprep.subr.mxu0 0.0
    %871 = vmatpush2.xpose.msra.mxu0 0.0
    %872 = vmatprep.subr.mxu0 0.0
    %873 = vmatpush2.xpose.msra.mxu0 0.0
    %874 = vmatprep.subr.mxu0 0.0
    %875 = vmatpush2.xpose.msra.mxu0 0.0
    %876 = vmatprep.subr.mxu0 0.0
    %877 = vmatpush2.xpose.msra.mxu0 0.0
    %878 = vmatprep.subr.mxu0 0.0
    %879 = vmatpush2.xpose.msra.mxu0 0.0
    %880 = vmatprep.subr.mxu0 0.0
    %881 = vmatpush2.xpose.msra.mxu0 0.0
    %882 = vmatprep.subr.mxu0 0.0
    %883 = vmatpush2.xpose.msra.mxu0 0.0
    %884 = vmatprep.subr.mxu0 0.0
    %885 = vmatpush2.xpose.msra.mxu0 0.0
    %886 = vmatprep.subr.mxu0 0.0
    %887 = vmatpush2.xpose.msra.mxu0 0.0
    %888 = vmatprep.subr.mxu0 0.0
    %889 = vmatpush2.xpose.msra.mxu0 0.0
    %890 = vmatprep.subr.mxu0 0.0
    %891 = vmatpush2.xpose.msra.mxu0 0.0
    %892 = vmatprep.subr.mxu0 0.0
    %893 = vmatpush2.xpose.msra.mxu0 0.0
    %894 = vmatprep.subr.mxu0 0.0
    %895 = vmatpush2.xpose.msra.mxu0 0.0
    %896 = vmatprep.subr.mxu0 0.0
    %897 = vmatpush2.xpose.msra.mxu0 0.0
    %898 = vmatprep.subr.mxu0 0.0
    %899 = vmatpush2.xpose.msra.mxu0 0.0
    %900 = vmatprep.mubr.f32.mxu0 0.0
    %901 = vmatmul.mubr.f32.gmra.mxu0 %v832
    %v902 = vpop.f32.mrf.mxu0
    %v903 = vadd.f32 0.0, %v902
    %v904 = vpop.f32.mrf.mxu0
    %905 = vdwg.mxu0
    %v906 = vmul.f32 %v903, 0.35355338
    %v907 = vsel %vm151, %v906, -inf
    %908 = vmax.xlane.f32.xlu0 %v907
    %v909 = vpop.xlane.xlu0 %908
    %v910 = vsub.f32 %v906, %v909
    %v911 = vmul.f32 %v910, 1.442695
    %v912 = vpow.pop %v911
    %v913 = vsel %vm151, %v912, 0.0
    %914 = vadd.xlane.f32.xlu0 %v913
    %v915 = vpop.xlane.xlu0 %914
    %v916 = vrcp.pop %v915
    %v917 = vmul.f32 %v912, %v916
    %918 = vrot.lane.b32.xlu0 %v145, 64
    %v919 = vpop.permute.xlu0 %918
    %v922 = vsel %vm151, %v917, 0
    %924 = vmatprep.subr.mxu0 0.0
    %925 = vmatpush1.msra.mxu0 0.0
    %926 = vmatprep.subr.mxu0 0.0
    %927 = vmatpush1.msra.mxu0 0.0
    %928 = vmatprep.subr.mxu0 0.0
    %929 = vmatpush1.msra.mxu0 0.0
    %930 = vmatprep.subr.mxu0 0.0
    %931 = vmatpush1.msra.mxu0 0.0
    %932 = vmatprep.subr.mxu0 0.0
    %933 = vmatpush1.msra.mxu0 0.0
    %934 = vmatprep.subr.mxu0 0.0
    %935 = vmatpush1.msra.mxu0 0.0
    %936 = vmatprep.subr.mxu0 0.0
    %937 = vmatpush1.msra.mxu0 0.0
    %938 = vmatprep.subr.mxu0 0.0
    %939 = vmatpush1.msra.mxu0 0.0
    %940 = vmatprep.subr.mxu0 0.0
    %941 = vmatpush1.msra.mxu0 0.0
    %942 = vmatprep.subr.mxu0 0.0
    %943 = vmatpush1.msra.mxu0 0.0
    %944 = vmatprep.subr.mxu0 0.0
    %945 = vmatpush1.msra.mxu0 0.0
    %946 = vmatprep.subr.mxu0 0.0
    %947 = vmatpush1.msra.mxu0 0.0
    %948 = vmatprep.subr.mxu0 0.0
    %949 = vmatpush1.msra.mxu0 0.0
    %950 = vmatprep.subr.mxu0 0.0
    %951 = vmatpush1.msra.mxu0 0.0
    %952 = vmatprep.subr.mxu0 0.0
    %953 = vmatpush1.msra.mxu0 0.0
    %954 = vmatprep.subr.mxu0 0.0
    %955 = vmatpush1.msra.mxu0 %v919
    %956 = vmatprep.subr.mxu0 0.0
    %957 = vmatpush2.msra.mxu0 0.0
    %958 = vmatprep.subr.mxu0 0.0
    %959 = vmatpush2.msra.mxu0 0.0
    %960 = vmatprep.subr.mxu0 0.0
    %961 = vmatpush2.msra.mxu0 0.0
    %962 = vmatprep.subr.mxu0 0.0
    %963 = vmatpush2.msra.mxu0 0.0
    %964 = vmatprep.subr.mxu0 0.0
    %965 = vmatpush2.msra.mxu0 0.0
    %966 = vmatprep.subr.mxu0 0.0
    %967 = vmatpush2.msra.mxu0 0.0
    %968 = vmatprep.subr.mxu0 0.0
    %969 = vmatpush2.msra.mxu0 0.0
    %970 = vmatprep.subr.mxu0 0.0
    %971 = vmatpush2.msra.mxu0 0.0
    %972 = vmatprep.subr.mxu0 0.0
    %973 = vmatpush2.msra.mxu0 0.0
    %974 = vmatprep.subr.mxu0 0.0
    %975 = vmatpush2.msra.mxu0 0.0
    %976 = vmatprep.subr.mxu0 0.0
    %977 = vmatpush2.msra.mxu0 0.0
    %978 = vmatprep.subr.mxu0 0.0
    %979 = vmatpush2.msra.mxu0 0.0
    %980 = vmatprep.subr.mxu0 0.0
    %981 = vmatpush2.msra.mxu0 0.0
    %982 = vmatprep.subr.mxu0 0.0
    %983 = vmatpush2.msra.mxu0 0.0
    %984 = vmatprep.subr.mxu0 0.0
    %985 = vmatpush2.msra.mxu0 0.0
    %986 = vmatprep.subr.mxu0 0.0
    %987 = vmatpush2.msra.mxu0 0.0
    %988 = vmatprep.mubr.f32.mxu0 0.0
    %989 = vmatmul.mubr.f32.gmra.mxu0 %v922
    %v990 = vpop.f32.mrf.mxu0
    %v991 = vadd.f32 0.0, %v990
    %v992 = vpop.f32.mrf.mxu0
    %993 = vdwg.mxu0
    %994 = vrot.lane.b32.xlu0 %v145, 120
    %v995 = vpop.permute.xlu0 %994
    %996 = vrot.lane.b32.xlu0 %v145, 88
    %v997 = vpop.permute.xlu0 %996
    %v998 = vsel %vm151, %v995, 0
    %v1000 = vsel %vm151, %v997, 0
    %1002 = vmatprep.subr.mxu0 0.0
    %1003 = vmatpush1.xpose.msra.mxu0 0.0
    %1004 = vmatprep.subr.mxu0 0.0
    %1005 = vmatpush1.xpose.msra.mxu0 0.0
    %1006 = vmatprep.subr.mxu0 0.0
    %1007 = vmatpush1.xpose.msra.mxu0 0.0
    %1008 = vmatprep.subr.mxu0 0.0
    %1009 = vmatpush1.xpose.msra.mxu0 0.0
    %1010 = vmatprep.subr.mxu0 0.0
    %1011 = vmatpush1.xpose.msra.mxu0 0.0
    %1012 = vmatprep.subr.mxu0 0.0
    %1013 = vmatpush1.xpose.msra.mxu0 0.0
    %1014 = vmatprep.subr.mxu0 0.0
    %1015 = vmatpush1.xpose.msra.mxu0 0.0
    %1016 = vmatprep.subr.mxu0 0.0
    %1017 = vmatpush1.xpose.msra.mxu0 0.0
    %1018 = vmatprep.subr.mxu0 0.0
    %1019 = vmatpush1.xpose.msra.mxu0 0.0
    %1020 = vmatprep.subr.mxu0 0.0
    %1021 = vmatpush1.xpose.msra.mxu0 0.0
    %1022 = vmatprep.subr.mxu0 0.0
    %1023 = vmatpush1.xpose.msra.mxu0 0.0
    %1024 = vmatprep.subr.mxu0 0.0
    %1025 = vmatpush1.xpose.msra.mxu0 0.0
    %1026 = vmatprep.subr.mxu0 0.0
    %1027 = vmatpush1.xpose.msra.mxu0 0.0
    %1028 = vmatprep.subr.mxu0 0.0
    %1029 = vmatpush1.xpose.msra.mxu0 0.0
    %1030 = vmatprep.subr.mxu0 0.0
    %1031 = vmatpush1.xpose.msra.mxu0 0.0
    %1032 = vmatprep.subr.mxu0 0.0
    %1033 = vmatpush1.xpose.msra.mxu0 %v1000
    %1034 = vmatprep.subr.mxu0 0.0
    %1035 = vmatpush2.xpose.msra.mxu0 0.0
    %1036 = vmatprep.subr.mxu0 0.0
    %1037 = vmatpush2.xpose.msra.mxu0 0.0
    %1038 = vmatprep.subr.mxu0 0.0
    %1039 = vmatpush2.xpose.msra.mxu0 0.0
    %1040 = vmatprep.subr.mxu0 0.0
    %1041 = vmatpush2.xpose.msra.mxu0 0.0
    %1042 = vmatprep.subr.mxu0 0.0
    %1043 = vmatpush2.xpose.msra.mxu0 0.0
    %1044 = vmatprep.subr.mxu0 0.0
    %1045 = vmatpush2.xpose.msra.mxu0 0.0
    %1046 = vmatprep.subr.mxu0 0.0
    %1047 = vmatpush2.xpose.msra.mxu0 0.0
    %1048 = vmatprep.subr.mxu0 0.0
    %1049 = vmatpush2.xpose.msra.mxu0 0.0
    %1050 = vmatprep.subr.mxu0 0.0
    %1051 = vmatpush2.xpose.msra.mxu0 0.0
    %1052 = vmatprep.subr.mxu0 0.0
    %1053 = vmatpush2.xpose.msra.mxu0 0.0
    %1054 = vmatprep.subr.mxu0 0.0
    %1055 = vmatpush2.xpose.msra.mxu0 0.0
    %1056 = vmatprep.subr.mxu0 0.0
    %1057 = vmatpush2.xpose.msra.mxu0 0.0
    %1058 = vmatprep.subr.mxu0 0.0
    %1059 = vmatpush2.xpose.msra.mxu0 0.0
    %1060 = vmatprep.subr.mxu0 0.0
    %1061 = vmatpush2.xpose.msra.mxu0 0.0
    %1062 = vmatprep.subr.mxu0 0.0
    %1063 = vmatpush2.xpose.msra.mxu0 0.0
    %1064 = vmatprep.subr.mxu0 0.0
    %1065 = vmatpush2.xpose.msra.mxu0 0.0
    %1066 = vmatprep.mubr.f32.mxu0 0.0
    %1067 = vmatmul.mubr.f32.gmra.mxu0 %v998
    %v1068 = vpop.f32.mrf.mxu0
    %v1069 = vadd.f32 0.0, %v1068
    %v1070 = vpop.f32.mrf.mxu0
    %1071 = vdwg.mxu0
    %v1072 = vmul.f32 %v1069, 0.35355338
    %v1073 = vsel %vm151, %v1072, -inf
    %1074 = vmax.xlane.f32.xlu0 %v1073
    %v1075 = vpop.xlane.xlu0 %1074
    %v1076 = vsub.f32 %v1072, %v1075
    %v1077 = vmul.f32 %v1076, 1.442695
    %v1078 = vpow.pop %v1077
    %v1079 = vsel %vm151, %v1078, 0.0
    %1080 = vadd.xlane.f32.xlu0 %v1079
    %v1081 = vpop.xlane.xlu0 %1080
    %v1082 = vrcp.pop %v1081
    %v1083 = vmul.f32 %v1078, %v1082
    %1084 = vrot.lane.b32.xlu0 %v145, 56
    %v1085 = vpop.permute.xlu0 %1084
    %v1088 = vsel %vm151, %v1083, 0
    %1090 = vmatprep.subr.mxu0 0.0
    %1091 = vmatpush1.msra.mxu0 0.0
    %1092 = vmatprep.subr.mxu0 0.0
    %1093 = vmatpush1.msra.mxu0 0.0
    %1094 = vmatprep.subr.mxu0 0.0
    %1095 = vmatpush1.msra.mxu0 0.0
    %1096 = vmatprep.subr.mxu0 0.0
    %1097 = vmatpush1.msra.mxu0 0.0
    %1098 = vmatprep.subr.mxu0 0.0
    %1099 = vmatpush1.msra.mxu0 0.0
    %1100 = vmatprep.subr.mxu0 0.0
    %1101 = vmatpush1.msra.mxu0 0.0
    %1102 = vmatprep.subr.mxu0 0.0
    %1103 = vmatpush1.msra.mxu0 0.0
    %1104 = vmatprep.subr.mxu0 0.0
    %1105 = vmatpush1.msra.mxu0 0.0
    %1106 = vmatprep.subr.mxu0 0.0
    %1107 = vmatpush1.msra.mxu0 0.0
    %1108 = vmatprep.subr.mxu0 0.0
    %1109 = vmatpush1.msra.mxu0 0.0
    %1110 = vmatprep.subr.mxu0 0.0
    %1111 = vmatpush1.msra.mxu0 0.0
    %1112 = vmatprep.subr.mxu0 0.0
    %1113 = vmatpush1.msra.mxu0 0.0
    %1114 = vmatprep.subr.mxu0 0.0
    %1115 = vmatpush1.msra.mxu0 0.0
    %1116 = vmatprep.subr.mxu0 0.0
    %1117 = vmatpush1.msra.mxu0 0.0
    %1118 = vmatprep.subr.mxu0 0.0
    %1119 = vmatpush1.msra.mxu0 0.0
    %1120 = vmatprep.subr.mxu0 0.0
    %1121 = vmatpush1.msra.mxu0 %v1085
    %1122 = vmatprep.subr.mxu0 0.0
    %1123 = vmatpush2.msra.mxu0 0.0
    %1124 = vmatprep.subr.mxu0 0.0
    %1125 = vmatpush2.msra.mxu0 0.0
    %1126 = vmatprep.subr.mxu0 0.0
    %1127 = vmatpush2.msra.mxu0 0.0
    %1128 = vmatprep.subr.mxu0 0.0
    %1129 = vmatpush2.msra.mxu0 0.0
    %1130 = vmatprep.subr.mxu0 0.0
    %1131 = vmatpush2.msra.mxu0 0.0
    %1132 = vmatprep.subr.mxu0 0.0
    %1133 = vmatpush2.msra.mxu0 0.0
    %1134 = vmatprep.subr.mxu0 0.0
    %1135 = vmatpush2.msra.mxu0 0.0
    %1136 = vmatprep.subr.mxu0 0.0
    %1137 = vmatpush2.msra.mxu0 0.0
    %1138 = vmatprep.subr.mxu0 0.0
    %1139 = vmatpush2.msra.mxu0 0.0
    %1140 = vmatprep.subr.mxu0 0.0
    %1141 = vmatpush2.msra.mxu0 0.0
    %1142 = vmatprep.subr.mxu0 0.0
    %1143 = vmatpush2.msra.mxu0 0.0
    %1144 = vmatprep.subr.mxu0 0.0
    %1145 = vmatpush2.msra.mxu0 0.0
    %1146 = vmatprep.subr.mxu0 0.0
    %1147 = vmatpush2.msra.mxu0 0.0
    %1148 = vmatprep.subr.mxu0 0.0
    %1149 = vmatpush2.msra.mxu0 0.0
    %1150 = vmatprep.subr.mxu0 0.0
    %1151 = vmatpush2.msra.mxu0 0.0
    %1152 = vmatprep.subr.mxu0 0.0
    %1153 = vmatpush2.msra.mxu0 0.0
    %1154 = vmatprep.mubr.f32.mxu0 0.0
    %1155 = vmatmul.mubr.f32.gmra.mxu0 %v1088
    %v1156 = vpop.f32.mrf.mxu0
    %v1157 = vadd.f32 0.0, %v1156
    %v1158 = vpop.f32.mrf.mxu0
    %1159 = vdwg.mxu0
    %1160 = vrot.lane.b32.xlu0 %v145, 112
    %v1161 = vpop.permute.xlu0 %1160
    %1162 = vrot.lane.b32.xlu0 %v145, 80
    %v1163 = vpop.permute.xlu0 %1162
    %v1164 = vsel %vm151, %v1161, 0
    %v1166 = vsel %vm151, %v1163, 0
    %1168 = vmatprep.subr.mxu0 0.0
    %1169 = vmatpush1.xpose.msra.mxu0 0.0
    %1170 = vmatprep.subr.mxu0 0.0
    %1171 = vmatpush1.xpose.msra.mxu0 0.0
    %1172 = vmatprep.subr.mxu0 0.0
    %1173 = vmatpush1.xpose.msra.mxu0 0.0
    %1174 = vmatprep.subr.mxu0 0.0
    %1175 = vmatpush1.xpose.msra.mxu0 0.0
    %1176 = vmatprep.subr.mxu0 0.0
    %1177 = vmatpush1.xpose.msra.mxu0 0.0
    %1178 = vmatprep.subr.mxu0 0.0
    %1179 = vmatpush1.xpose.msra.mxu0 0.0
    %1180 = vmatprep.subr.mxu0 0.0
    %1181 = vmatpush1.xpose.msra.mxu0 0.0
    %1182 = vmatprep.subr.mxu0 0.0
    %1183 = vmatpush1.xpose.msra.mxu0 0.0
    %1184 = vmatprep.subr.mxu0 0.0
    %1185 = vmatpush1.xpose.msra.mxu0 0.0
    %1186 = vmatprep.subr.mxu0 0.0
    %1187 = vmatpush1.xpose.msra.mxu0 0.0
    %1188 = vmatprep.subr.mxu0 0.0
    %1189 = vmatpush1.xpose.msra.mxu0 0.0
    %1190 = vmatprep.subr.mxu0 0.0
    %1191 = vmatpush1.xpose.msra.mxu0 0.0
    %1192 = vmatprep.subr.mxu0 0.0
    %1193 = vmatpush1.xpose.msra.mxu0 0.0
    %1194 = vmatprep.subr.mxu0 0.0
    %1195 = vmatpush1.xpose.msra.mxu0 0.0
    %1196 = vmatprep.subr.mxu0 0.0
    %1197 = vmatpush1.xpose.msra.mxu0 0.0
    %1198 = vmatprep.subr.mxu0 0.0
    %1199 = vmatpush1.xpose.msra.mxu0 %v1166
    %1200 = vmatprep.subr.mxu0 0.0
    %1201 = vmatpush2.xpose.msra.mxu0 0.0
    %1202 = vmatprep.subr.mxu0 0.0
    %1203 = vmatpush2.xpose.msra.mxu0 0.0
    %1204 = vmatprep.subr.mxu0 0.0
    %1205 = vmatpush2.xpose.msra.mxu0 0.0
    %1206 = vmatprep.subr.mxu0 0.0
    %1207 = vmatpush2.xpose.msra.mxu0 0.0
    %1208 = vmatprep.subr.mxu0 0.0
    %1209 = vmatpush2.xpose.msra.mxu0 0.0
    %1210 = vmatprep.subr.mxu0 0.0
    %1211 = vmatpush2.xpose.msra.mxu0 0.0
    %1212 = vmatprep.subr.mxu0 0.0
    %1213 = vmatpush2.xpose.msra.mxu0 0.0
    %1214 = vmatprep.subr.mxu0 0.0
    %1215 = vmatpush2.xpose.msra.mxu0 0.0
    %1216 = vmatprep.subr.mxu0 0.0
    %1217 = vmatpush2.xpose.msra.mxu0 0.0
    %1218 = vmatprep.subr.mxu0 0.0
    %1219 = vmatpush2.xpose.msra.mxu0 0.0
    %1220 = vmatprep.subr.mxu0 0.0
    %1221 = vmatpush2.xpose.msra.mxu0 0.0
    %1222 = vmatprep.subr.mxu0 0.0
    %1223 = vmatpush2.xpose.msra.mxu0 0.0
    %1224 = vmatprep.subr.mxu0 0.0
    %1225 = vmatpush2.xpose.msra.mxu0 0.0
    %1226 = vmatprep.subr.mxu0 0.0
    %1227 = vmatpush2.xpose.msra.mxu0 0.0
    %1228 = vmatprep.subr.mxu0 0.0
    %1229 = vmatpush2.xpose.msra.mxu0 0.0
    %1230 = vmatprep.subr.mxu0 0.0
    %1231 = vmatpush2.xpose.msra.mxu0 0.0
    %1232 = vmatprep.mubr.f32.mxu0 0.0
    %1233 = vmatmul.mubr.f32.gmra.mxu0 %v1164
    %v1234 = vpop.f32.mrf.mxu0
    %v1235 = vadd.f32 0.0, %v1234
    %v1236 = vpop.f32.mrf.mxu0
    %1237 = vdwg.mxu0
    %v1238 = vmul.f32 %v1235, 0.35355338
    %v1239 = vsel %vm151, %v1238, -inf
    %1240 = vmax.xlane.f32.xlu0 %v1239
    %v1241 = vpop.xlane.xlu0 %1240
    %v1242 = vsub.f32 %v1238, %v1241
    %v1243 = vmul.f32 %v1242, 1.442695
    %v1244 = vpow.pop %v1243
    %v1245 = vsel %vm151, %v1244, 0.0
    %1246 = vadd.xlane.f32.xlu0 %v1245
    %v1247 = vpop.xlane.xlu0 %1246
    %v1248 = vrcp.pop %v1247
    %v1249 = vmul.f32 %v1244, %v1248
    %1250 = vrot.lane.b32.xlu0 %v145, 48
    %v1251 = vpop.permute.xlu0 %1250
    %v1254 = vsel %vm151, %v1249, 0
    %1256 = vmatprep.subr.mxu0 0.0
    %1257 = vmatpush1.msra.mxu0 0.0
    %1258 = vmatprep.subr.mxu0 0.0
    %1259 = vmatpush1.msra.mxu0 0.0
    %1260 = vmatprep.subr.mxu0 0.0
    %1261 = vmatpush1.msra.mxu0 0.0
    %1262 = vmatprep.subr.mxu0 0.0
    %1263 = vmatpush1.msra.mxu0 0.0
    %1264 = vmatprep.subr.mxu0 0.0
    %1265 = vmatpush1.msra.mxu0 0.0
    %1266 = vmatprep.subr.mxu0 0.0
    %1267 = vmatpush1.msra.mxu0 0.0
    %1268 = vmatprep.subr.mxu0 0.0
    %1269 = vmatpush1.msra.mxu0 0.0
    %1270 = vmatprep.subr.mxu0 0.0
    %1271 = vmatpush1.msra.mxu0 0.0
    %1272 = vmatprep.subr.mxu0 0.0
    %1273 = vmatpush1.msra.mxu0 0.0
    %1274 = vmatprep.subr.mxu0 0.0
    %1275 = vmatpush1.msra.mxu0 0.0
    %1276 = vmatprep.subr.mxu0 0.0
    %1277 = vmatpush1.msra.mxu0 0.0
    %1278 = vmatprep.subr.mxu0 0.0
    %1279 = vmatpush1.msra.mxu0 0.0
    %1280 = vmatprep.subr.mxu0 0.0
    %1281 = vmatpush1.msra.mxu0 0.0
    %1282 = vmatprep.subr.mxu0 0.0
    %1283 = vmatpush1.msra.mxu0 0.0
    %1284 = vmatprep.subr.mxu0 0.0
    %1285 = vmatpush1.msra.mxu0 0.0
    %1286 = vmatprep.subr.mxu0 0.0
    %1287 = vmatpush1.msra.mxu0 %v1251
    %1288 = vmatprep.subr.mxu0 0.0
    %1289 = vmatpush2.msra.mxu0 0.0
    %1290 = vmatprep.subr.mxu0 0.0
    %1291 = vmatpush2.msra.mxu0 0.0
    %1292 = vmatprep.subr.mxu0 0.0
    %1293 = vmatpush2.msra.mxu0 0.0
    %1294 = vmatprep.subr.mxu0 0.0
    %1295 = vmatpush2.msra.mxu0 0.0
    %1296 = vmatprep.subr.mxu0 0.0
    %1297 = vmatpush2.msra.mxu0 0.0
    %1298 = vmatprep.subr.mxu0 0.0
    %1299 = vmatpush2.msra.mxu0 0.0
    %1300 = vmatprep.subr.mxu0 0.0
    %1301 = vmatpush2.msra.mxu0 0.0
    %1302 = vmatprep.subr.mxu0 0.0
    %1303 = vmatpush2.msra.mxu0 0.0
    %1304 = vmatprep.subr.mxu0 0.0
    %1305 = vmatpush2.msra.mxu0 0.0
    %1306 = vmatprep.subr.mxu0 0.0
    %1307 = vmatpush2.msra.mxu0 0.0
    %1308 = vmatprep.subr.mxu0 0.0
    %1309 = vmatpush2.msra.mxu0 0.0
    %1310 = vmatprep.subr.mxu0 0.0
    %1311 = vmatpush2.msra.mxu0 0.0
    %1312 = vmatprep.subr.mxu0 0.0
    %1313 = vmatpush2.msra.mxu0 0.0
    %1314 = vmatprep.subr.mxu0 0.0
    %1315 = vmatpush2.msra.mxu0 0.0
    %1316 = vmatprep.subr.mxu0 0.0
    %1317 = vmatpush2.msra.mxu0 0.0
    %1318 = vmatprep.subr.mxu0 0.0
    %1319 = vmatpush2.msra.mxu0 0.0
    %1320 = vmatprep.mubr.f32.mxu0 0.0
    %1321 = vmatmul.mubr.f32.gmra.mxu0 %v1254
    %v1322 = vpop.f32.mrf.mxu0
    %v1323 = vadd.f32 0.0, %v1322
    %v1324 = vpop.f32.mrf.mxu0
    %1325 = vdwg.mxu0
    %1326 = vrot.lane.b32.xlu0 %v145, 104
    %v1327 = vpop.permute.xlu0 %1326
    %1328 = vrot.lane.b32.xlu0 %v145, 72
    %v1329 = vpop.permute.xlu0 %1328
    %v1330 = vsel %vm151, %v1327, 0
    %v1332 = vsel %vm151, %v1329, 0
    %1334 = vmatprep.subr.mxu0 0.0
    %1335 = vmatpush1.xpose.msra.mxu0 0.0
    %1336 = vmatprep.subr.mxu0 0.0
    %1337 = vmatpush1.xpose.msra.mxu0 0.0
    %1338 = vmatprep.subr.mxu0 0.0
    %1339 = vmatpush1.xpose.msra.mxu0 0.0
    %1340 = vmatprep.subr.mxu0 0.0
    %1341 = vmatpush1.xpose.msra.mxu0 0.0
    %1342 = vmatprep.subr.mxu0 0.0
    %1343 = vmatpush1.xpose.msra.mxu0 0.0
    %1344 = vmatprep.subr.mxu0 0.0
    %1345 = vmatpush1.xpose.msra.mxu0 0.0
    %1346 = vmatprep.subr.mxu0 0.0
    %1347 = vmatpush1.xpose.msra.mxu0 0.0
    %1348 = vmatprep.subr.mxu0 0.0
    %1349 = vmatpush1.xpose.msra.mxu0 0.0
    %1350 = vmatprep.subr.mxu0 0.0
    %1351 = vmatpush1.xpose.msra.mxu0 0.0
    %1352 = vmatprep.subr.mxu0 0.0
    %1353 = vmatpush1.xpose.msra.mxu0 0.0
    %1354 = vmatprep.subr.mxu0 0.0
    %1355 = vmatpush1.xpose.msra.mxu0 0.0
    %1356 = vmatprep.subr.mxu0 0.0
    %1357 = vmatpush1.xpose.msra.mxu0 0.0
    %1358 = vmatprep.subr.mxu0 0.0
    %1359 = vmatpush1.xpose.msra.mxu0 0.0
    %1360 = vmatprep.subr.mxu0 0.0
    %1361 = vmatpush1.xpose.msra.mxu0 0.0
    %1362 = vmatprep.subr.mxu0 0.0
    %1363 = vmatpush1.xpose.msra.mxu0 0.0
    %1364 = vmatprep.subr.mxu0 0.0
    %1365 = vmatpush1.xpose.msra.mxu0 %v1332
    %1366 = vmatprep.subr.mxu0 0.0
    %1367 = vmatpush2.xpose.msra.mxu0 0.0
    %1368 = vmatprep.subr.mxu0 0.0
    %1369 = vmatpush2.xpose.msra.mxu0 0.0
    %1370 = vmatprep.subr.mxu0 0.0
    %1371 = vmatpush2.xpose.msra.mxu0 0.0
    %1372 = vmatprep.subr.mxu0 0.0
    %1373 = vmatpush2.xpose.msra.mxu0 0.0
    %1374 = vmatprep.subr.mxu0 0.0
    %1375 = vmatpush2.xpose.msra.mxu0 0.0
    %1376 = vmatprep.subr.mxu0 0.0
    %1377 = vmatpush2.xpose.msra.mxu0 0.0
    %1378 = vmatprep.subr.mxu0 0.0
    %1379 = vmatpush2.xpose.msra.mxu0 0.0
    %1380 = vmatprep.subr.mxu0 0.0
    %1381 = vmatpush2.xpose.msra.mxu0 0.0
    %1382 = vmatprep.subr.mxu0 0.0
    %1383 = vmatpush2.xpose.msra.mxu0 0.0
    %1384 = vmatprep.subr.mxu0 0.0
    %1385 = vmatpush2.xpose.msra.mxu0 0.0
    %1386 = vmatprep.subr.mxu0 0.0
    %1387 = vmatpush2.xpose.msra.mxu0 0.0
    %1388 = vmatprep.subr.mxu0 0.0
    %1389 = vmatpush2.xpose.msra.mxu0 0.0
    %1390 = vmatprep.subr.mxu0 0.0
    %1391 = vmatpush2.xpose.msra.mxu0 0.0
    %1392 = vmatprep.subr.mxu0 0.0
    %1393 = vmatpush2.xpose.msra.mxu0 0.0
    %1394 = vmatprep.subr.mxu0 0.0
    %1395 = vmatpush2.xpose.msra.mxu0 0.0
    %1396 = vmatprep.subr.mxu0 0.0
    %1397 = vmatpush2.xpose.msra.mxu0 0.0
    %1398 = vmatprep.mubr.f32.mxu0 0.0
    %1399 = vmatmul.mubr.f32.gmra.mxu0 %v1330
    %v1400 = vpop.f32.mrf.mxu0
    %v1401 = vadd.f32 0.0, %v1400
    %v1402 = vpop.f32.mrf.mxu0
    %1403 = vdwg.mxu0
    %v1404 = vmul.f32 %v1401, 0.35355338
    %v1405 = vsel %vm151, %v1404, -inf
    %1406 = vmax.xlane.f32.xlu0 %v1405
    %v1407 = vpop.xlane.xlu0 %1406
    %v1408 = vsub.f32 %v1404, %v1407
    %v1409 = vmul.f32 %v1408, 1.442695
    %v1410 = vpow.pop %v1409
    %v1411 = vsel %vm151, %v1410, 0.0
    %1412 = vadd.xlane.f32.xlu0 %v1411
    %v1413 = vpop.xlane.xlu0 %1412
    %v1414 = vrcp.pop %v1413
    %v1415 = vmul.f32 %v1410, %v1414
    %1416 = vrot.lane.b32.xlu0 %v145, 40
    %v1417 = vpop.permute.xlu0 %1416
    %v1420 = vsel %vm151, %v1415, 0
    %1422 = vmatprep.subr.mxu0 0.0
    %1423 = vmatpush1.msra.mxu0 0.0
    %1424 = vmatprep.subr.mxu0 0.0
    %1425 = vmatpush1.msra.mxu0 0.0
    %1426 = vmatprep.subr.mxu0 0.0
    %1427 = vmatpush1.msra.mxu0 0.0
    %1428 = vmatprep.subr.mxu0 0.0
    %1429 = vmatpush1.msra.mxu0 0.0
    %1430 = vmatprep.subr.mxu0 0.0
    %1431 = vmatpush1.msra.mxu0 0.0
    %1432 = vmatprep.subr.mxu0 0.0
    %1433 = vmatpush1.msra.mxu0 0.0
    %1434 = vmatprep.subr.mxu0 0.0
    %1435 = vmatpush1.msra.mxu0 0.0
    %1436 = vmatprep.subr.mxu0 0.0
    %1437 = vmatpush1.msra.mxu0 0.0
    %1438 = vmatprep.subr.mxu0 0.0
    %1439 = vmatpush1.msra.mxu0 0.0
    %1440 = vmatprep.subr.mxu0 0.0
    %1441 = vmatpush1.msra.mxu0 0.0
    %1442 = vmatprep.subr.mxu0 0.0
    %1443 = vmatpush1.msra.mxu0 0.0
    %1444 = vmatprep.subr.mxu0 0.0
    %1445 = vmatpush1.msra.mxu0 0.0
    %1446 = vmatprep.subr.mxu0 0.0
    %1447 = vmatpush1.msra.mxu0 0.0
    %1448 = vmatprep.subr.mxu0 0.0
    %1449 = vmatpush1.msra.mxu0 0.0
    %1450 = vmatprep.subr.mxu0 0.0
    %1451 = vmatpush1.msra.mxu0 0.0
    %1452 = vmatprep.subr.mxu0 0.0
    %1453 = vmatpush1.msra.mxu0 %v1417
    %1454 = vmatprep.subr.mxu0 0.0
    %1455 = vmatpush2.msra.mxu0 0.0
    %1456 = vmatprep.subr.mxu0 0.0
    %1457 = vmatpush2.msra.mxu0 0.0
    %1458 = vmatprep.subr.mxu0 0.0
    %1459 = vmatpush2.msra.mxu0 0.0
    %1460 = vmatprep.subr.mxu0 0.0
    %1461 = vmatpush2.msra.mxu0 0.0
    %1462 = vmatprep.subr.mxu0 0.0
    %1463 = vmatpush2.msra.mxu0 0.0
    %1464 = vmatprep.subr.mxu0 0.0
    %1465 = vmatpush2.msra.mxu0 0.0
    %1466 = vmatprep.subr.mxu0 0.0
    %1467 = vmatpush2.msra.mxu0 0.0
    %1468 = vmatprep.subr.mxu0 0.0
    %1469 = vmatpush2.msra.mxu0 0.0
    %1470 = vmatprep.subr.mxu0 0.0
    %1471 = vmatpush2.msra.mxu0 0.0
    %1472 = vmatprep.subr.mxu0 0.0
    %1473 = vmatpush2.msra.mxu0 0.0
    %1474 = vmatprep.subr.mxu0 0.0
    %1475 = vmatpush2.msra.mxu0 0.0
    %1476 = vmatprep.subr.mxu0 0.0
    %1477 = vmatpush2.msra.mxu0 0.0
    %1478 = vmatprep.subr.mxu0 0.0
    %1479 = vmatpush2.msra.mxu0 0.0
    %1480 = vmatprep.subr.mxu0 0.0
    %1481 = vmatpush2.msra.mxu0 0.0
    %1482 = vmatprep.subr.mxu0 0.0
    %1483 = vmatpush2.msra.mxu0 0.0
    %1484 = vmatprep.subr.mxu0 0.0
    %1485 = vmatpush2.msra.mxu0 0.0
    %1486 = vmatprep.mubr.f32.mxu0 0.0
    %1487 = vmatmul.mubr.f32.gmra.mxu0 %v1420
    %v1488 = vpop.f32.mrf.mxu0
    %v1489 = vadd.f32 0.0, %v1488
    %v1490 = vpop.f32.mrf.mxu0
    %1491 = vdwg.mxu0
    %1493 = vrot.lane.b32.xlu0 %v1157, 8
    %v1494 = vpop.permute.xlu0 %1493
    %1497 = vrot.lane.b32.xlu0 %v1323, 16
    %v1498 = vpop.permute.xlu0 %1497
    %1501 = vrot.lane.b32.xlu0 %v1489, 24
    %v1502 = vpop.permute.xlu0 %1501
    %v1504 = vsel %vm151, %v991, %v1494
    %v1505 = vsel %vm825, %v1504, %v1498
    %v1506 = vsel %vm827, %v1505, %v1502
    %v1507 = vlaneseq
    %v1508 = vshrl.u32 %v1507, 7
    %v1509 = vsub.s32 1, %v1508
    %v1510 = vrot.slane %v60, %v1509
    %1515 = vrot.lane.b32.xlu0 %v48, 32
    %v1516 = vpop.permute.xlu0 %1515
    %1517 = vrot.lane.b32.xlu0 %v51, 32
    %v1518 = vpop.permute.xlu0 %1517
    %1519 = vrot.lane.b32.xlu0 %v54, 32
    %v1520 = vpop.permute.xlu0 %1519
    %1521 = vrot.lane.b32.xlu0 %v57, 32
    %v1522 = vpop.permute.xlu0 %1521
    %v1528 = vsel %vm66, %v828, 0
    %v1531 = vsel %vm66, %v1506, 0
    %1533 = vmatprep.subr.mxu0 0.0
    %1534 = vmatpush1.msra.mxu0 0.0
    %1535 = vmatprep.subr.mxu0 0.0
    %1536 = vmatpush1.msra.mxu0 0.0
    %1537 = vmatprep.subr.mxu0 0.0
    %1538 = vmatpush1.msra.mxu0 0.0
    %1539 = vmatprep.subr.mxu0 0.0
    %1540 = vmatpush1.msra.mxu0 0.0
    %1541 = vmatprep.subr.mxu0 0.0
    %1542 = vmatpush1.msra.mxu0 0.0
    %1543 = vmatprep.subr.mxu0 0.0
    %1544 = vmatpush1.msra.mxu0 0.0
    %1545 = vmatprep.subr.mxu0 0.0
    %1546 = vmatpush1.msra.mxu0 0.0
    %1547 = vmatprep.subr.mxu0 0.0
    %1548 = vmatpush1.msra.mxu0 0.0
    %1549 = vmatprep.subr.mxu0 0.0
    %1550 = vmatpush1.msra.mxu0 0.0
    %1551 = vmatprep.subr.mxu0 0.0
    %1552 = vmatpush1.msra.mxu0 0.0
    %1553 = vmatprep.subr.mxu0 0.0
    %1554 = vmatpush1.msra.mxu0 0.0
    %1555 = vmatprep.subr.mxu0 0.0
    %1556 = vmatpush1.msra.mxu0 0.0
    %1557 = vmatprep.subr.mxu0 0.0
    %1558 = vmatpush1.msra.mxu0 %v1522
    %1559 = vmatprep.subr.mxu0 0.0
    %1560 = vmatpush1.msra.mxu0 %v1520
    %1561 = vmatprep.subr.mxu0 0.0
    %1562 = vmatpush1.msra.mxu0 %v1518
    %1563 = vmatprep.subr.mxu0 0.0
    %1564 = vmatpush1.msra.mxu0 %v1516
    %1565 = vmatprep.subr.mxu0 0.0
    %1566 = vmatpush2.msra.mxu0 0.0
    %1567 = vmatprep.subr.mxu0 0.0
    %1568 = vmatpush2.msra.mxu0 0.0
    %1569 = vmatprep.subr.mxu0 0.0
    %1570 = vmatpush2.msra.mxu0 0.0
    %1571 = vmatprep.subr.mxu0 0.0
    %1572 = vmatpush2.msra.mxu0 0.0
    %1573 = vmatprep.subr.mxu0 0.0
    %1574 = vmatpush2.msra.mxu0 0.0
    %1575 = vmatprep.subr.mxu0 0.0
    %1576 = vmatpush2.msra.mxu0 0.0
    %1577 = vmatprep.subr.mxu0 0.0
    %1578 = vmatpush2.msra.mxu0 0.0
    %1579 = vmatprep.subr.mxu0 0.0
    %1580 = vmatpush2.msra.mxu0 0.0
    %1581 = vmatprep.subr.mxu0 0.0
    %1582 = vmatpush2.msra.mxu0 0.0
    %1583 = vmatprep.subr.mxu0 0.0
    %1584 = vmatpush2.msra.mxu0 0.0
    %1585 = vmatprep.subr.mxu0 0.0
    %1586 = vmatpush2.msra.mxu0 0.0
    %1587 = vmatprep.subr.mxu0 0.0
    %1588 = vmatpush2.msra.mxu0 0.0
    %1589 = vmatprep.subr.mxu0 0.0
    %1590 = vmatpush2.msra.mxu0 0.0
    %1591 = vmatprep.subr.mxu0 0.0
    %1592 = vmatpush2.msra.mxu0 0.0
    %1593 = vmatprep.subr.mxu0 0.0
    %1594 = vmatpush2.msra.mxu0 0.0
    %1595 = vmatprep.subr.mxu0 0.0
    %1596 = vmatpush2.msra.mxu0 0.0
    %1597 = vmatprep.mubr.f32.mxu0 0.0
    %1598 = vmatmul.mubr.f32.gmra.mxu0 %v1528
    %v1599 = vpop.f32.mrf.mxu0
    %v1600 = vadd.f32 %v1510, %v1599
    %v1601 = vpop.f32.mrf.mxu0
    %1602 = vmatprep.mubr.f32.mxu0 0.0
    %1603 = vmatmul.mubr.f32.gmra.mxu0 %v1531
    %v1604 = vpop.f32.mrf.mxu0
    %v1605 = vadd.f32 %v1510, %v1604
    %v1606 = vpop.f32.mrf.mxu0
    %1607 = vdwg.mxu0
    %v1608 = vadd.f32 %v1600, %v46
    %v1609 = vadd.f32 %v1605, %v47
    %v1610 = vsel %vm66, %v1608, 0.0
    %1611 = vadd.xlane.f32.xlu0 %v1610
    %v1612 = vpop.xlane.xlu0 %1611
    %v1613 = vsel %vm66, %v1609, 0.0
    %1614 = vadd.xlane.f32.xlu0 %v1613
    %v1615 = vpop.xlane.xlu0 %1614
    %v1616 = vrcp.pop 32.0
    %v1617 = vmul.f32 %v1612, %v1616
    %v1618 = vmul.f32 %v1615, %v1616
    %v1619 = vsub.f32 %v1608, %v1617
    %v1620 = vsub.f32 %v1609, %v1618
    %v1621 = vmul.f32 %v1619, %v1619
    %v1622 = vmul.f32 %v1620, %v1620
    %v1623 = vsel %vm66, %v1621, 0.0
    %1624 = vadd.xlane.f32.xlu0 %v1623
    %v1625 = vpop.xlane.xlu0 %1624
    %v1626 = vsel %vm66, %v1622, 0.0
    %1627 = vadd.xlane.f32.xlu0 %v1626
    %v1628 = vpop.xlane.xlu0 %1627
    %v1629 = vmul.f32 %v1625, %v1616
    %v1630 = vmul.f32 %v1628, %v1616
    %v1631 = vadd.f32 %v1629, 1e-05
    %v1632 = vadd.f32 %v1630, 1e-05
    %v1633 = vrsqrt.pop %v1631
    %v1634 = vrsqrt.pop %v1632
    %v1635 = vmul.f32 %v1619, %v1633
    %v1636 = vmul.f32 %v1620, %v1634
    %v1637 = vlaneseq
    %v1638 = vshrl.u32 %v1637, 7
    %v1639 = vsub.s32 2, %v1638
    %v1640 = vrot.slane %v60, %v1639
    %v1641 = vmul.f32 %v1635, %v1640
    %v1642 = vmul.f32 %v1636, %v1640
    %v1643 = vlaneseq
    %v1644 = vshrl.u32 %v1643, 7
    %v1645 = vsub.s32 3, %v1644
    %v1646 = vrot.slane %v60, %v1645
    %v1647 = vadd.f32 %v1641, %v1646
    %v1648 = vadd.f32 %v1642, %v1646
    %v1649 = vlaneseq
    %v1650 = vshrl.u32 %v1649, 7
    %v1651 = vsub.s32 4, %v1650
    %v1652 = vrot.slane %v60, %v1651
    %v1654 = vsel %vm66, %v1647, 0
    %v1657 = vsel %vm66, %v1648, 0
    %1659 = vmatprep.subr.mxu0 0.0
    %1660 = vmatpush1.msra.mxu0 0.0
    %1661 = vmatprep.subr.mxu0 0.0
    %1662 = vmatpush1.msra.mxu0 0.0
    %1663 = vmatprep.subr.mxu0 0.0
    %1664 = vmatpush1.msra.mxu0 0.0
    %1665 = vmatprep.subr.mxu0 0.0
    %1666 = vmatpush1.msra.mxu0 0.0
    %1667 = vmatprep.subr.mxu0 0.0
    %1668 = vmatpush1.msra.mxu0 0.0
    %1669 = vmatprep.subr.mxu0 0.0
    %1670 = vmatpush1.msra.mxu0 0.0
    %1671 = vmatprep.subr.mxu0 0.0
    %1672 = vmatpush1.msra.mxu0 0.0
    %1673 = vmatprep.subr.mxu0 0.0
    %1674 = vmatpush1.msra.mxu0 0.0
    %1675 = vmatprep.subr.mxu0 0.0
    %1676 = vmatpush1.msra.mxu0 0.0
    %1677 = vmatprep.subr.mxu0 0.0
    %1678 = vmatpush1.msra.mxu0 0.0
    %1679 = vmatprep.subr.mxu0 0.0
    %1680 = vmatpush1.msra.mxu0 0.0
    %1681 = vmatprep.subr.mxu0 0.0
    %1682 = vmatpush1.msra.mxu0 0.0
    %1683 = vmatprep.subr.mxu0 0.0
    %1684 = vmatpush1.msra.mxu0 %v58
    %1685 = vmatprep.subr.mxu0 0.0
    %1686 = vmatpush1.msra.mxu0 %v55
    %1687 = vmatprep.subr.mxu0 0.0
    %1688 = vmatpush1.msra.mxu0 %v52
    %1689 = vmatprep.subr.mxu0 0.0
    %1690 = vmatpush1.msra.mxu0 %v49
    %1691 = vmatprep.subr.mxu0 0.0
    %1692 = vmatpush2.msra.mxu0 0.0
    %1693 = vmatprep.subr.mxu0 0.0
    %1694 = vmatpush2.msra.mxu0 0.0
    %1695 = vmatprep.subr.mxu0 0.0
    %1696 = vmatpush2.msra.mxu0 0.0
    %1697 = vmatprep.subr.mxu0 0.0
    %1698 = vmatpush2.msra.mxu0 0.0
    %1699 = vmatprep.subr.mxu0 0.0
    %1700 = vmatpush2.msra.mxu0 0.0
    %1701 = vmatprep.subr.mxu0 0.0
    %1702 = vmatpush2.msra.mxu0 0.0
    %1703 = vmatprep.subr.mxu0 0.0
    %1704 = vmatpush2.msra.mxu0 0.0
    %1705 = vmatprep.subr.mxu0 0.0
    %1706 = vmatpush2.msra.mxu0 0.0
    %1707 = vmatprep.subr.mxu0 0.0
    %1708 = vmatpush2.msra.mxu0 0.0
    %1709 = vmatprep.subr.mxu0 0.0
    %1710 = vmatpush2.msra.mxu0 0.0
    %1711 = vmatprep.subr.mxu0 0.0
    %1712 = vmatpush2.msra.mxu0 0.0
    %1713 = vmatprep.subr.mxu0 0.0
    %1714 = vmatpush2.msra.mxu0 0.0
    %1715 = vmatprep.subr.mxu0 0.0
    %1716 = vmatpush2.msra.mxu0 0.0
    %1717 = vmatprep.subr.mxu0 0.0
    %1718 = vmatpush2.msra.mxu0 0.0
    %1719 = vmatprep.subr.mxu0 0.0
    %1720 = vmatpush2.msra.mxu0 0.0
    %1721 = vmatprep.subr.mxu0 0.0
    %1722 = vmatpush2.msra.mxu0 0.0
    %1723 = vmatprep.mubr.f32.mxu0 0.0
    %1724 = vmatmul.mubr.f32.gmra.mxu0 %v1654
    %v1725 = vpop.f32.mrf.mxu0
    %v1726 = vadd.f32 %v1652, %v1725
    %v1727 = vpop.f32.mrf.mxu0
    %1728 = vmatprep.mubr.f32.mxu0 0.0
    %1729 = vmatmul.mubr.f32.gmra.mxu0 %v1657
    %v1730 = vpop.f32.mrf.mxu0
    %v1731 = vadd.f32 %v1652, %v1730
    %v1732 = vpop.f32.mrf.mxu0
    %1733 = vdwg.mxu0
    %v1734 = vmax.f32 %v1726, 0.0
    %v1735 = vmax.f32 %v1731, 0.0
    %v1736 = vld [vmem:[%s2] sm:$0xff]
    %v1737 = vld [vmem:[%s2 + $0x8] sm:$0xff]
    %v1738 = vld [vmem:[%s2 + $0x10] sm:$0xff]
    %v1739 = vld [vmem:[%s2 + $0x18] sm:$0xff]
    %v1740 = vld [vmem:[%s2 + $0x20] sm:$0xff]
    %v1741 = vld [vmem:[%s2 + $0x28] sm:$0xff]
    %v1742 = vld [vmem:[%s2 + $0x30] sm:$0xff]
    %v1743 = vld [vmem:[%s2 + $0x38] sm:$0xff]
    %v1744 = vlaneseq
    %v1745 = vshrl.u32 %v1744, 7
    %v1746 = vsub.s32 5, %v1745
    %v1747 = vrot.slane %v60, %v1746
    %vm1748 = vcmask 523264
    %v1750 = vsel %vm1748, %v1734, 0
    %v1753 = vsel %vm1748, %v1735, 0
    %1755 = vmatprep.subr.mxu0 0.0
    %1756 = vmatpush1.msra.mxu0 0.0
    %1757 = vmatprep.subr.mxu0 0.0
    %1758 = vmatpush1.msra.mxu0 0.0
    %1759 = vmatprep.subr.mxu0 0.0
    %1760 = vmatpush1.msra.mxu0 0.0
    %1761 = vmatprep.subr.mxu0 0.0
    %1762 = vmatpush1.msra.mxu0 0.0
    %1763 = vmatprep.subr.mxu0 0.0
    %1764 = vmatpush1.msra.mxu0 0.0
    %1765 = vmatprep.subr.mxu0 0.0
    %1766 = vmatpush1.msra.mxu0 0.0
    %1767 = vmatprep.subr.mxu0 0.0
    %1768 = vmatpush1.msra.mxu0 0.0
    %1769 = vmatprep.subr.mxu0 0.0
    %1770 = vmatpush1.msra.mxu0 0.0
    %1771 = vmatprep.subr.mxu0 0.0
    %1772 = vmatpush1.msra.mxu0 %v1743
    %1773 = vmatprep.subr.mxu0 0.0
    %1774 = vmatpush1.msra.mxu0 %v1742
    %1775 = vmatprep.subr.mxu0 0.0
    %1776 = vmatpush1.msra.mxu0 %v1741
    %1777 = vmatprep.subr.mxu0 0.0
    %1778 = vmatpush1.msra.mxu0 %v1740
    %1779 = vmatprep.subr.mxu0 0.0
    %1780 = vmatpush1.msra.mxu0 %v1739
    %1781 = vmatprep.subr.mxu0 0.0
    %1782 = vmatpush1.msra.mxu0 %v1738
    %1783 = vmatprep.subr.mxu0 0.0
    %1784 = vmatpush1.msra.mxu0 %v1737
    %1785 = vmatprep.subr.mxu0 0.0
    %1786 = vmatpush1.msra.mxu0 %v1736
    %1787 = vmatprep.subr.mxu0 0.0
    %1788 = vmatpush2.msra.mxu0 0.0
    %1789 = vmatprep.subr.mxu0 0.0
    %1790 = vmatpush2.msra.mxu0 0.0
    %1791 = vmatprep.subr.mxu0 0.0
    %1792 = vmatpush2.msra.mxu0 0.0
    %1793 = vmatprep.subr.mxu0 0.0
    %1794 = vmatpush2.msra.mxu0 0.0
    %1795 = vmatprep.subr.mxu0 0.0
    %1796 = vmatpush2.msra.mxu0 0.0
    %1797 = vmatprep.subr.mxu0 0.0
    %1798 = vmatpush2.msra.mxu0 0.0
    %1799 = vmatprep.subr.mxu0 0.0
    %1800 = vmatpush2.msra.mxu0 0.0
    %1801 = vmatprep.subr.mxu0 0.0
    %1802 = vmatpush2.msra.mxu0 0.0
    %1803 = vmatprep.subr.mxu0 0.0
    %1804 = vmatpush2.msra.mxu0 0.0
    %1805 = vmatprep.subr.mxu0 0.0
    %1806 = vmatpush2.msra.mxu0 0.0
    %1807 = vmatprep.subr.mxu0 0.0
    %1808 = vmatpush2.msra.mxu0 0.0
    %1809 = vmatprep.subr.mxu0 0.0
    %1810 = vmatpush2.msra.mxu0 0.0
    %1811 = vmatprep.subr.mxu0 0.0
    %1812 = vmatpush2.msra.mxu0 0.0
    %1813 = vmatprep.subr.mxu0 0.0
    %1814 = vmatpush2.msra.mxu0 0.0
    %1815 = vmatprep.subr.mxu0 0.0
    %1816 = vmatpush2.msra.mxu0 0.0
    %1817 = vmatprep.subr.mxu0 0.0
    %1818 = vmatpush2.msra.mxu0 0.0
    %1819 = vmatprep.mubr.f32.mxu0 0.0
    %1820 = vmatmul.mubr.f32.gmra.mxu0 %v1750
    %v1821 = vpop.f32.mrf.mxu0
    %v1822 = vadd.f32 %v1747, %v1821
    %v1823 = vpop.f32.mrf.mxu0
    %1824 = vmatprep.mubr.f32.mxu0 0.0
    %1825 = vmatmul.mubr.f32.gmra.mxu0 %v1753
    %v1826 = vpop.f32.mrf.mxu0
    %v1827 = vadd.f32 %v1747, %v1826
    %v1828 = vpop.f32.mrf.mxu0
    %1829 = vdwg.mxu0
    %v1830 = vadd.f32 %v1822, %v1647
    %v1831 = vadd.f32 %v1827, %v1648
    %v1832 = vsel %vm66, %v1830, 0.0
    %1833 = vadd.xlane.f32.xlu0 %v1832
    %v1834 = vpop.xlane.xlu0 %1833
    %v1835 = vsel %vm66, %v1831, 0.0
    %1836 = vadd.xlane.f32.xlu0 %v1835
    %v1837 = vpop.xlane.xlu0 %1836
    %v1838 = vmul.f32 %v1834, %v1616
    %v1839 = vmul.f32 %v1837, %v1616
    %v1840 = vsub.f32 %v1830, %v1838
    %v1841 = vsub.f32 %v1831, %v1839
    %v1842 = vmul.f32 %v1840, %v1840
    %v1843 = vmul.f32 %v1841, %v1841
    %v1844 = vsel %vm66, %v1842, 0.0
    %1845 = vadd.xlane.f32.xlu0 %v1844
    %v1846 = vpop.xlane.xlu0 %1845
    %v1847 = vsel %vm66, %v1843, 0.0
    %1848 = vadd.xlane.f32.xlu0 %v1847
    %v1849 = vpop.xlane.xlu0 %1848
    %v1850 = vmul.f32 %v1846, %v1616
    %v1851 = vmul.f32 %v1849, %v1616
    %v1852 = vadd.f32 %v1850, 1e-05
    %v1853 = vadd.f32 %v1851, 1e-05
    %v1854 = vrsqrt.pop %v1852
    %v1855 = vrsqrt.pop %v1853
    %v1856 = vmul.f32 %v1840, %v1854
    %v1857 = vmul.f32 %v1841, %v1855
    %v1858 = vlaneseq
    %v1859 = vshrl.u32 %v1858, 7
    %v1860 = vsub.s32 6, %v1859
    %v1861 = vrot.slane %v60, %v1860
    %v1862 = vmul.f32 %v1856, %v1861
    %v1863 = vmul.f32 %v1857, %v1861
    %v1864 = vlaneseq
    %v1865 = vshrl.u32 %v1864, 7
    %v1866 = vsub.s32 7, %v1865
    %v1867 = vrot.slane %v60, %v1866
    %v1868 = vadd.f32 %v1862, %v1867
    %v1869 = vadd.f32 %v1863, %v1867
    %v1871 = vrot.slane %v1868, 7
    %v1874 = vrot.slane %v1869, 6
    %vm1876 = vcmask 1040384
    %v1877 = vsel %vm1876, %v1871, %v1874
    %v1878 = vlaneseq
    %v1879 = vshrl.u32 %v1878, 7
    %v1880 = vsub.s32 0, %v1879
    %v1881 = vrot.slane %v61, %v1880
    %1890 = vrot.lane.b32.xlu0 %v49, 64
    %v1891 = vpop.permute.xlu0 %1890
    %1892 = vrot.lane.b32.xlu0 %v50, 64
    %v1893 = vpop.permute.xlu0 %1892
    %1894 = vrot.lane.b32.xlu0 %v52, 64
    %v1895 = vpop.permute.xlu0 %1894
    %1896 = vrot.lane.b32.xlu0 %v53, 64
    %v1897 = vpop.permute.xlu0 %1896
    %1898 = vrot.lane.b32.xlu0 %v55, 64
    %v1899 = vpop.permute.xlu0 %1898
    %1900 = vrot.lane.b32.xlu0 %v56, 64
    %v1901 = vpop.permute.xlu0 %1900
    %1902 = vrot.lane.b32.xlu0 %v58, 64
    %v1903 = vpop.permute.xlu0 %1902
    %1904 = vrot.lane.b32.xlu0 %v59, 64
    %v1905 = vpop.permute.xlu0 %1904
    %v1906 = vsel %vm1748, %v1891, %v1893
    %v1907 = vsel %vm1748, %v1895, %v1897
    %v1908 = vsel %vm1748, %v1899, %v1901
    %v1909 = vsel %vm1748, %v1903, %v1905
    %v1915 = vsel %vm66, %v1877, 0
    %1917 = vmatprep.subr.mxu0 0.0
    %1918 = vmatpush1.msra.mxu0 0.0
    %1919 = vmatprep.subr.mxu0 0.0
    %1920 = vmatpush1.msra.mxu0 0.0
    %1921 = vmatprep.subr.mxu0 0.0
    %1922 = vmatpush1.msra.mxu0 0.0
    %1923 = vmatprep.subr.mxu0 0.0
    %1924 = vmatpush1.msra.mxu0 0.0
    %1925 = vmatprep.subr.mxu0 0.0
    %1926 = vmatpush1.msra.mxu0 0.0
    %1927 = vmatprep.subr.mxu0 0.0
    %1928 = vmatpush1.msra.mxu0 0.0
    %1929 = vmatprep.subr.mxu0 0.0
    %1930 = vmatpush1.msra.mxu0 0.0
    %1931 = vmatprep.subr.mxu0 0.0
    %1932 = vmatpush1.msra.mxu0 0.0
    %1933 = vmatprep.subr.mxu0 0.0
    %1934 = vmatpush1.msra.mxu0 0.0
    %1935 = vmatprep.subr.mxu0 0.0
    %1936 = vmatpush1.msra.mxu0 0.0
    %1937 = vmatprep.subr.mxu0 0.0
    %1938 = vmatpush1.msra.mxu0 0.0
    %1939 = vmatprep.subr.mxu0 0.0
    %1940 = vmatpush1.msra.mxu0 0.0
    %1941 = vmatprep.subr.mxu0 0.0
    %1942 = vmatpush1.msra.mxu0 %v1909
    %1943 = vmatprep.subr.mxu0 0.0
    %1944 = vmatpush1.msra.mxu0 %v1908
    %1945 = vmatprep.subr.mxu0 0.0
    %1946 = vmatpush1.msra.mxu0 %v1907
    %1947 = vmatprep.subr.mxu0 0.0
    %1948 = vmatpush1.msra.mxu0 %v1906
    %1949 = vmatprep.subr.mxu0 0.0
    %1950 = vmatpush2.msra.mxu0 0.0
    %1951 = vmatprep.subr.mxu0 0.0
    %1952 = vmatpush2.msra.mxu0 0.0
    %1953 = vmatprep.subr.mxu0 0.0
    %1954 = vmatpush2.msra.mxu0 0.0
    %1955 = vmatprep.subr.mxu0 0.0
    %1956 = vmatpush2.msra.mxu0 0.0
    %1957 = vmatprep.subr.mxu0 0.0
    %1958 = vmatpush2.msra.mxu0 0.0
    %1959 = vmatprep.subr.mxu0 0.0
    %1960 = vmatpush2.msra.mxu0 0.0
    %1961 = vmatprep.subr.mxu0 0.0
    %1962 = vmatpush2.msra.mxu0 0.0
    %1963 = vmatprep.subr.mxu0 0.0
    %1964 = vmatpush2.msra.mxu0 0.0
    %1965 = vmatprep.subr.mxu0 0.0
    %1966 = vmatpush2.msra.mxu0 0.0
    %1967 = vmatprep.subr.mxu0 0.0
    %1968 = vmatpush2.msra.mxu0 0.0
    %1969 = vmatprep.subr.mxu0 0.0
    %1970 = vmatpush2.msra.mxu0 0.0
    %1971 = vmatprep.subr.mxu0 0.0
    %1972 = vmatpush2.msra.mxu0 0.0
    %1973 = vmatprep.subr.mxu0 0.0
    %1974 = vmatpush2.msra.mxu0 0.0
    %1975 = vmatprep.subr.mxu0 0.0
    %1976 = vmatpush2.msra.mxu0 0.0
    %1977 = vmatprep.subr.mxu0 0.0
    %1978 = vmatpush2.msra.mxu0 0.0
    %1979 = vmatprep.subr.mxu0 0.0
    %1980 = vmatpush2.msra.mxu0 0.0
    %1981 = vmatprep.mubr.f32.mxu0 0.0
    %1982 = vmatmul.mubr.f32.gmra.mxu0 %v1915
    %v1983 = vpop.f32.mrf.mxu0
    %v1984 = vadd.f32 %v1881, %v1983
    %v1985 = vpop.f32.mrf.mxu0
    %1986 = vdwg.mxu0
    %1987 = vst [vmem:[#allocation7] sm:$0x3] %v1984
    // Predicated region
    $region26: #{tpu_custom_call.1} parent=1 // pred_check
      _
    $region27: #{tpu_custom_call.1} parent=1 // pred_check_branch
      %1989 = sbr.rel (0) target = $region29
    $region28: #{tpu_custom_call.1} parent=1 // pred_region
      %s1991 = ssub.s32 32, 32
      %1992 = vsyncadd [#allocation4], %s1991
      %s1994 = sshll.u32 [#allocation7], 4
      %s1995 = int_to_ptr.vmem [resolvable:$true] %s1994
      %1997 = dma.vmem_to_hbm [thread:$0]  %s1995, 32, %s4, [#allocation4]
    $region29: #{tpu_custom_call.1} parent=1 // pred_fallthru
      _
    // Predicated region
    $region30: #{tpu_custom_call.1} parent=1 // pred_check
      _
    $region31: #{tpu_custom_call.1} parent=1 // pred_check_branch
      %1999 = sbr.rel (0) target = $region33
    $region32: #{tpu_custom_call.1} parent=1 // pred_region
      %2000 = dma.done [#allocation4], 32
    $region33: #{tpu_custom_call.1} parent=1 // pred_fallthru
      _
    %2001 = vsyncpa [#allocation3], 1
    %2002 = vsyncpa [#allocation6], 1
    %2003 = vsyncpa [#allocation4], 1

</llo_original>
